<compile_context>
chip_gen: v6e
topology: v6e:2x2x1
jax: 0.10.0
libtpu: 0.0.40
codegen_flags: <defaults>
</compile_context>

<pallas_src>
import jax
import jax.numpy as jnp
from jax.experimental import pallas as pl
from jax.experimental.pallas import tpu as pltpu


# ----------------------------- tiling helpers ------------------------------ #

def _round_up(x, m):
    return ((x + m - 1) // m) * m


def _divisors(n):
    return [d for d in range(1, n + 1) if n % d == 0]


def _vmem_budget():
    """Generation-aware VMEM budget: (per-step block budget, vmem_limit_bytes)."""
    cap = 64 * 1024 * 1024                       # conservative fallback (v7x physical / TC)
    try:
        info = pltpu.get_tpu_info()
        cap = int(getattr(info, "vmem_capacity_bytes", cap))
    except Exception:
        pass
    budget = min(cap // 4, 32 * 1024 * 1024)     # v7x -> 16 MiB, v5e/v6e -> 32 MiB
    vmem_limit = min(cap // 2, 64 * 1024 * 1024)  # never above half physical
    return budget, vmem_limit


def _choose_tiles(B, N, step_bytes_fn, *, budget_bytes, min_steps=2):
    """Jointly pick (Gb, tN).

    Constraints: tN is a multiple of 8 (or the full N) so last-two-dims tiling and the
    in-kernel leading-dim reshapes stay clean; the estimated per-step VMEM (incl. double
    buffering + f32 temporaries) fits the generation-aware budget.  Prefers >= min_steps
    grid steps so both v7x TensorCores get work; among those, takes the biggest block to
    amortize the ~0.35us/step grid overhead.
    """
    tn_opts = [d for d in _divisors(N) if d % 8 == 0] or [N]
    gb_opts = _divisors(B)
    cands = []
    for tn in tn_opts:
        for gb in gb_opts:
            cands.append((gb, tn, (B // gb) * (N // tn), step_bytes_fn(gb, tn)))
    feasible = [c for c in cands if c[3] <= budget_bytes]
    if not feasible:                     # can't shrink further: take the smallest and hope
        feasible = [min(cands, key=lambda c: c[3])]
    multi = [c for c in feasible if c[2] >= min_steps]
    pool = multi or feasible
    gb, tn, _, _ = max(pool, key=lambda c: (c[3], c[0]))
    return gb, tn


# ----------------------------- kernels ------------------------------------- #

def _width_kernel(x_ref, gamma_ref, w_ref, sa_ref, sb_ref, scales_ref,
                  branch_ref, res_ref, beta_ref):
    Gb, S, tN, D = x_ref.shape
    a_scale = scales_ref[0]
    b_scale = scales_ref[1]

    r = x_ref[...].astype(jnp.float32)                           # (Gb, S, tN, D)

    # ---- phase (a): RMSNorm + fused alpha/beta projection on the MXU ------------------
    r2d = r.reshape(Gb * S * tN, D)                              # leading-dim merge: free
    ssq = jnp.sum(r2d * r2d, axis=-1, keepdims=True)             # (R, 1)
    inv = jax.lax.rsqrt(jnp.maximum(ssq, 1e-24))                 # EUP; == 1/max(||x||, 1e-12)
    gscale = (gamma_ref[...].astype(jnp.float32) + 1.0) * (D ** 0.5)   # (1, D)
    normed2d = (r2d * inv) * gscale                              # (R, D)
    proj = jnp.tanh(jnp.dot(normed2d, w_ref[...].astype(jnp.float32),
                            preferred_element_type=jnp.float32))       # (R, S+2) one MXU dot
    proj = proj.reshape(Gb, S, tN, S + 2)                        # leading-dim split: free
    # `normed2d` is dead here: only `r` and the tiny `proj` stay live through the mixing.

    # ---- dynamic beta (column S+1) + static beta; stored as (Gb, S, tN, 1) -------------
    for s in range(S):
        beta_s = proj[:, s, :, S + 1:S + 2] * b_scale + sb_ref[s]       # (Gb, tN, 1)
        beta_ref[:, s] = beta_s.astype(beta_ref.dtype)

    # ---- phase (b): stream mixing, unrolled over the tiny (S+1, S) column space --------
    for t in range(S + 1):
        acc = None
        for s in range(S):
            # static_alpha[s, t] is a scalar SMEM read -> free broadcast.
            coeff = proj[:, s, :, t:t + 1] * a_scale + sa_ref[s, t]     # (Gb, tN, 1)
            term = coeff * r[:, s]                                      # (Gb, tN, D)
            acc = term if acc is None else acc + term
        if t == 0:
            branch_ref[...] = acc.astype(branch_ref.dtype)              # branch input
        else:
            res_ref[:, t - 1] = acc.astype(res_ref.dtype)               # next residual t-1


def _depth_kernel(bo_ref, res_ref, beta_ref, out_ref):
    # Pure HBM-bandwidth bound: stream per residual stream so no full rank-4 broadcast
    # temporary coexists with the output block (halves peak live VMEM at a given tile).
    S = res_ref.shape[1]
    bo = bo_ref[...].astype(jnp.float32)                         # (Gb, tN, D)
    for s in range(S):
        beta_s = beta_ref[:, s].astype(jnp.float32)              # (Gb, tN, 1)
        upd = bo * beta_s + res_ref[:, s].astype(jnp.float32)
        out_ref[:, s] = upd.astype(out_ref.dtype)


# ----------------------------- wrappers ------------------------------------ #

def width_connection(x, params, num_streams):
    """x: (B*S, N, D) ('(b s) n d'). Works in the stream-major (B, S, N, D) view (free reshape)."""
    S = num_streams
    BS, N, D = x.shape
    B = BS // S
    xr = x.reshape(B, S, N, D)                                   # free view, no transpose
    esize = jnp.dtype(x.dtype).itemsize

    gamma = params["gamma"].reshape(1, D).astype(jnp.float32)
    # Fused projection weight: columns 0..S -> dynamic_alpha, column S+1 -> dynamic_beta.
    w_proj = jnp.concatenate(
        [params["dynamic_alpha_fn"], params["dynamic_beta_fn"].reshape(D, 1)],
        axis=1).astype(jnp.float32)                              # (D, S+2)
    sa = params["static_alpha"].astype(jnp.float32)              # (S, S+1) -> SMEM
    sb = params["static_beta"].astype(jnp.float32)               # (S,)     -> SMEM
    scales = jnp.stack([params["dynamic_alpha_scale"],
                        params["dynamic_beta_scale"]]).astype(jnp.float32)  # (2,) -> SMEM

    budget, vmem_limit = _vmem_budget()

    def step_bytes(gb, tn):
        tnp, dp = _round_up(tn, 8), _round_up(D, 128)
        io = (gb * S * tnp * dp * esize            # x block
              + gb * tnp * dp * esize              # branch block
              + gb * S * tnp * dp * esize          # residuals block
              + gb * S * tnp * 128 * 4)            # beta block (last dim 1 -> 128 lanes)
        tmp = 4 * gb * S * tnp * dp * 4            # f32 in-kernel temporaries (r, normed, accs)
        return 2 * io + tmp                        # x2: Pallas double-buffers i/o blocks

    Gb, tN = _choose_tiles(B, N, step_bytes, budget_bytes=budget)
    grid = (B // Gb, N // tN)
    smem = pl.BlockSpec(memory_space=pltpu.MemorySpace.SMEM)

    out_shapes = (
        jax.ShapeDtypeStruct((B, N, D), x.dtype),            # branch_input
        jax.ShapeDtypeStruct((B, S, N, D), x.dtype),          # next residuals (stream-major)
        jax.ShapeDtypeStruct((B, S, N, 1), jnp.float32),      # beta (broadcast-ready layout)
    )
    branch_input, residuals, beta = pl.pallas_call(
        _width_kernel,
        out_shape=out_shapes,
        grid_spec=pltpu.PrefetchScalarGridSpec(
            num_scalar_prefetch=0,
            grid=grid,
            in_specs=[
                pl.BlockSpec((Gb, S, tN, D), lambda b, n: (b, 0, n, 0)),
                pl.BlockSpec((1, D), lambda b, n: (0, 0)),
                pl.BlockSpec((D, S + 2), lambda b, n: (0, 0)),
                smem,   # static_alpha
                smem,   # static_beta
                smem,   # scales
            ],
            out_specs=[
                pl.BlockSpec((Gb, tN, D), lambda b, n: (b, n, 0)),
                pl.BlockSpec((Gb, S, tN, D), lambda b, n: (b, 0, n, 0)),
                pl.BlockSpec((Gb, S, tN, 1), lambda b, n: (b, 0, n, 0)),
            ],
        ),
        compiler_params=pltpu.CompilerParams(
            dimension_semantics=("parallel", "parallel"),
            vmem_limit_bytes=vmem_limit),
    )(xr, gamma, w_proj, sa, sb, scales)
    return branch_input, residuals, beta


def depth_connection(branch_output, residuals, beta, num_streams):
    """branch_output: (B, N, D); residuals: (B, S, N, D); beta: (B, S, N, 1).
    Output is written stream-major, so '(b s) n d' is a free reshape."""
    del num_streams
    B, S, N, D = residuals.shape
    esize = jnp.dtype(residuals.dtype).itemsize
    budget, vmem_limit = _vmem_budget()

    def step_bytes(gb, tn):
        tnp, dp = _round_up(tn, 8), _round_up(D, 128)
        io = ((1 + 2 * S) * gb * tnp * dp * esize   # bo + residuals_in + out
              + gb * S * tnp * 128 * 4)             # beta
        tmp = 2 * gb * tnp * dp * 4
        return 2 * io + tmp

    Gb, tN = _choose_tiles(B, N, step_bytes, budget_bytes=budget)

    out = pl.pallas_call(
        _depth_kernel,
        out_shape=jax.ShapeDtypeStruct((B, S, N, D), residuals.dtype),
        grid_spec=pltpu.PrefetchScalarGridSpec(
            num_scalar_prefetch=0,
            grid=(B // Gb, N // tN),
            in_specs=[
                pl.BlockSpec((Gb, tN, D), lambda b, n: (b, n, 0)),
                pl.BlockSpec((Gb, S, tN, D), lambda b, n: (b, 0, n, 0)),
                pl.BlockSpec((Gb, S, tN, 1), lambda b, n: (b, 0, n, 0)),
            ],
            out_specs=pl.BlockSpec((Gb, S, tN, D), lambda b, n: (b, 0, n, 0)),
        ),
        compiler_params=pltpu.CompilerParams(
            dimension_semantics=("parallel", "parallel"),
            vmem_limit_bytes=vmem_limit),
        input_output_aliases={1: 0},   # reuse the residuals HBM buffer for the output
    )(branch_output, residuals, beta)
    # stream-major (B, S, N, D) -> '(b s) n d' is a free reshape (no transpose).
    # dropout(p=0.0) == identity.
    # TODO(synk): dropout with p > 0 would need pltpu.prng_* inside the kernel.
    return out.reshape(B * S, N, D)


def hyper_connections_forward(residuals, params, num_streams):
    """Mirrors HyperConnections.forward with branch=None: returns (branch_input, add_residual_fn)."""
    branch_input, res, beta = width_connection(residuals, params, num_streams)

    def add_residual_fn(branch_out):
        return depth_connection(branch_out, res, beta, num_streams)

    return branch_input, add_residual_fn


# ----------------------------- params & reference -------------------------- #

def init_params(key, dim, num_streams, layer_index=0):
    S = num_streams
    k1, k2, k3 = jax.random.split(key, 3)
    init_alpha0 = jnp.zeros((S, 1), jnp.float32).at[layer_index % S, 0].set(1.0)
    static_alpha = jnp.concatenate([init_alpha0, jnp.eye(S, dtype=jnp.float32)], axis=1)
    return dict(
        gamma=0.05 * jax.random.normal(k1, (dim,), jnp.float32),
        static_beta=jnp.ones((S,), jnp.float32),
        static_alpha=static_alpha,
        dynamic_alpha_fn=0.02 * jax.random.normal(k2, (dim, S + 1), jnp.float32),
        dynamic_alpha_scale=jnp.asarray(0.01, jnp.float32),
        dynamic_beta_fn=0.02 * jax.random.normal(k3, (dim,), jnp.float32),
        dynamic_beta_scale=jnp.asarray(0.01, jnp.float32),
    )


def reference_forward(x, params, S):
    """Pure-JAX port of the PyTorch module (identity branch), for checking."""
    BS, N, D = x.shape
    B = BS // S
    r = jnp.transpose(x.reshape(B, S, N, D), (0, 2, 1, 3))          # (B, N, S, D)
    l2 = jnp.sqrt(jnp.sum(r * r, -1, keepdims=True))
    normed = r / jnp.maximum(l2, 1e-12) * (D ** 0.5) * (params["gamma"] + 1.0)
    wc = jnp.tanh(normed @ params["dynamic_alpha_fn"])
    alpha = wc * params["dynamic_alpha_scale"] + params["static_alpha"]
    dc = jnp.tanh(normed @ params["dynamic_beta_fn"])
    beta = dc * params["dynamic_beta_scale"] + params["static_beta"]
    mix = jnp.einsum('bnst,bnsd->bntd', alpha, r)
    branch_input = mix[..., 0, :]
    res = mix[..., 1:, :]
    branch_out = branch_input                                       # identity branch
    res = branch_out[..., None, :] * beta[..., None] + res
    out = jnp.transpose(res, (0, 2, 1, 3)).reshape(BS, N, D)
    return branch_input, out


# ----------------------------- main ---------------------------------------- #

if __name__ == "__main__":
    B, S, N, D = 2, 4, 8, 32          # batch, residual streams, tokens, dim
    key = jax.random.PRNGKey(0)
    kx, kp = jax.random.split(key)
    x = jax.random.normal(kx, (B * S, N, D), jnp.float32)
    params = init_params(kp, D, S, layer_index=0)

    branch_input, add_residual_fn = hyper_connections_forward(x, params, S)
    out = add_residual_fn(branch_input)          # branch=None => identity branch here
    out = jax.block_until_ready(out)

    ref_bi, ref_out = reference_forward(x, params, S)
    assert branch_input.shape == (B, N, D) and out.shape == (B * S, N, D)
    assert jnp.allclose(branch_input, ref_bi, atol=1e-4, rtol=1e-4)
    assert jnp.allclose(out, ref_out, atol=1e-4, rtol=1e-4)
    print("KERNEL_OK")
</pallas_src>

<mosaic_0001>
module attributes {stable_mosaic.version = 11 : i64} {
  func.func @_width_kernel(%arg0: i32, %arg1: i32, %arg2: memref<1x4x8x32xf32, #tpu.memory_space<vmem>>, %arg3: memref<1x32xf32, #tpu.memory_space<vmem>>, %arg4: memref<32x6xf32, #tpu.memory_space<vmem>>, %arg5: memref<4x5xf32, #tpu.memory_space<smem>>, %arg6: memref<4xf32, #tpu.memory_space<smem>>, %arg7: memref<2xf32, #tpu.memory_space<smem>>, %arg8: memref<1x8x32xf32, #tpu.memory_space<vmem>>, %arg9: memref<1x4x8x32xf32, #tpu.memory_space<vmem>>, %arg10: memref<1x4x8x1xf32, #tpu.memory_space<vmem>>) attributes {dimension_semantics = [#tpu.dimension_semantics<parallel>, #tpu.dimension_semantics<parallel>], iteration_bounds = array<i64: 2, 1>, scalar_prefetch = 0 : i64, scratch_operands = 0 : i64, tpu.core_type = #tpu.core_type<tc>, window_params = [{transform_indices = @transform_0, window_bounds = array<i64: 1, 4, 8, 32>}, {pipeline_mode = #tpu.pipeline_mode<synchronous>, transform_indices = @transform_1, window_bounds = array<i64: 1, 32>}, {pipeline_mode = #tpu.pipeline_mode<synchronous>, transform_indices = @transform_2, window_bounds = array<i64: 32, 6>}, {transform_indices = @transform_3, window_bounds = array<i64: 4, 5>}, {transform_indices = @transform_4, window_bounds = array<i64: 4>}, {transform_indices = @transform_5, window_bounds = array<i64: 2>}, {transform_indices = @transform_6, window_bounds = array<i64: 1, 8, 32>}, {transform_indices = @transform_7, window_bounds = array<i64: 1, 4, 8, 32>}, {transform_indices = @transform_8, window_bounds = array<i64: 1, 4, 8, 1>}]} {
    %c0 = arith.constant 0 : index
    %0 = memref.load %arg7[%c0] : memref<2xf32, #tpu.memory_space<smem>>
    %c1 = arith.constant 1 : index
    %1 = memref.load %arg7[%c1] : memref<2xf32, #tpu.memory_space<smem>>
    %c0_0 = arith.constant 0 : index
    %c0_1 = arith.constant 0 : index
    %c0_2 = arith.constant 0 : index
    %c0_3 = arith.constant 0 : index
    %2 = vector.load %arg2[%c0_0, %c0_1, %c0_2, %c0_3] : memref<1x4x8x32xf32, #tpu.memory_space<vmem>>, vector<1x4x8x32xf32>
    %3 = vector.shape_cast %2 : vector<1x4x8x32xf32> to vector<32x32xf32>
    %4 = arith.mulf %3, %3 : vector<32x32xf32>
    %cst = arith.constant dense<0.000000e+00> : vector<32xf32>
    %5 = vector.multi_reduction <add>, %4, %cst [1] : vector<32x32xf32> to vector<32xf32>
    %6 = vector.shape_cast %5 : vector<32xf32> to vector<32x1xf32>
    %cst_4 = arith.constant 1.000000e-24 : f32
    %7 = vector.broadcast %cst_4 : f32 to vector<32x1xf32>
    %8 = arith.maximumf %6, %7 : vector<32x1xf32>
    %9 = math.rsqrt %8 : vector<32x1xf32>
    %c0_5 = arith.constant 0 : index
    %c0_6 = arith.constant 0 : index
    %10 = vector.load %arg3[%c0_5, %c0_6] : memref<1x32xf32, #tpu.memory_space<vmem>>, vector<1x32xf32>
    %cst_7 = arith.constant 1.000000e+00 : f32
    %11 = vector.broadcast %cst_7 : f32 to vector<1x32xf32>
    %12 = arith.addf %10, %11 : vector<1x32xf32>
    %cst_8 = arith.constant 5.65685415 : f32
    %13 = vector.broadcast %cst_8 : f32 to vector<1x32xf32>
    %14 = arith.mulf %12, %13 : vector<1x32xf32>
    %15 = vector.broadcast %9 : vector<32x1xf32> to vector<32x32xf32>
    %16 = arith.mulf %3, %15 : vector<32x32xf32>
    %17 = vector.broadcast %14 : vector<1x32xf32> to vector<32x32xf32>
    %18 = arith.mulf %16, %17 : vector<32x32xf32>
    %c0_9 = arith.constant 0 : index
    %c0_10 = arith.constant 0 : index
    %19 = vector.load %arg4[%c0_9, %c0_10] : memref<32x6xf32, #tpu.memory_space<vmem>>, vector<32x6xf32>
    %cst_11 = arith.constant dense<0.000000e+00> : vector<32x6xf32>
    %20 = tpu.matmul %18, %19, %cst_11 {dimension_numbers = #tpu.dot_dimension_numbers<[1], [0], [0], [1], [0, 0, 1, 1], [], []>} : vector<32x32xf32>, vector<32x6xf32>, vector<32x6xf32> -> vector<32x6xf32>
    %21 = math.tanh %20 : vector<32x6xf32>
    %22 = vector.shape_cast %21 : vector<32x6xf32> to vector<1x4x8x6xf32>
    %23 = vector.extract_strided_slice %22 {offsets = [0, 0, 0, 5], sizes = [1, 1, 8, 1], strides = [1, 1, 1, 1]} : vector<1x4x8x6xf32> to vector<1x1x8x1xf32>
    %24 = vector.shape_cast %23 : vector<1x1x8x1xf32> to vector<1x8x1xf32>
    %25 = vector.broadcast %1 : f32 to vector<1x8x1xf32>
    %26 = arith.mulf %24, %25 : vector<1x8x1xf32>
    %c0_12 = arith.constant 0 : index
    %27 = memref.load %arg6[%c0_12] : memref<4xf32, #tpu.memory_space<smem>>
    %28 = vector.broadcast %27 : f32 to vector<1x8x1xf32>
    %29 = arith.addf %26, %28 : vector<1x8x1xf32>
    %c0_13 = arith.constant 0 : index
    %c0_14 = arith.constant 0 : index
    %c0_15 = arith.constant 0 : index
    %c0_16 = arith.constant 0 : index
    %30 = vector.load %arg10[%c0_13, %c0_14, %c0_15, %c0_16] : memref<1x4x8x1xf32, #tpu.memory_space<vmem>>, vector<1x1x8x1xf32>
    %31 = vector.shape_cast %30 : vector<1x1x8x1xf32> to vector<1x8x1xf32>
    %32 = vector.shape_cast %29 : vector<1x8x1xf32> to vector<1x1x8x1xf32>
    tpu.vector_store %arg10[%c0_13, %c0_14, %c0_15, %c0_16], %32 {strides = array<i32>} : memref<1x4x8x1xf32, #tpu.memory_space<vmem>>, vector<1x1x8x1xf32>,
    %33 = vector.extract_strided_slice %22 {offsets = [0, 1, 0, 5], sizes = [1, 1, 8, 1], strides = [1, 1, 1, 1]} : vector<1x4x8x6xf32> to vector<1x1x8x1xf32>
    %34 = vector.shape_cast %33 : vector<1x1x8x1xf32> to vector<1x8x1xf32>
    %35 = vector.broadcast %1 : f32 to vector<1x8x1xf32>
    %36 = arith.mulf %34, %35 : vector<1x8x1xf32>
    %c1_17 = arith.constant 1 : index
    %37 = memref.load %arg6[%c1_17] : memref<4xf32, #tpu.memory_space<smem>>
    %38 = vector.broadcast %37 : f32 to vector<1x8x1xf32>
    %39 = arith.addf %36, %38 : vector<1x8x1xf32>
    %c0_18 = arith.constant 0 : index
    %c1_19 = arith.constant 1 : index
    %c0_20 = arith.constant 0 : index
    %c0_21 = arith.constant 0 : index
    %40 = vector.load %arg10[%c0_18, %c1_19, %c0_20, %c0_21] : memref<1x4x8x1xf32, #tpu.memory_space<vmem>>, vector<1x1x8x1xf32>
    %41 = vector.shape_cast %40 : vector<1x1x8x1xf32> to vector<1x8x1xf32>
    %42 = vector.shape_cast %39 : vector<1x8x1xf32> to vector<1x1x8x1xf32>
    tpu.vector_store %arg10[%c0_18, %c1_19, %c0_20, %c0_21], %42 {strides = array<i32>} : memref<1x4x8x1xf32, #tpu.memory_space<vmem>>, vector<1x1x8x1xf32>,
    %43 = vector.extract_strided_slice %22 {offsets = [0, 2, 0, 5], sizes = [1, 1, 8, 1], strides = [1, 1, 1, 1]} : vector<1x4x8x6xf32> to vector<1x1x8x1xf32>
    %44 = vector.shape_cast %43 : vector<1x1x8x1xf32> to vector<1x8x1xf32>
    %45 = vector.broadcast %1 : f32 to vector<1x8x1xf32>
    %46 = arith.mulf %44, %45 : vector<1x8x1xf32>
    %c2 = arith.constant 2 : index
    %47 = memref.load %arg6[%c2] : memref<4xf32, #tpu.memory_space<smem>>
    %48 = vector.broadcast %47 : f32 to vector<1x8x1xf32>
    %49 = arith.addf %46, %48 : vector<1x8x1xf32>
    %c0_22 = arith.constant 0 : index
    %c2_23 = arith.constant 2 : index
    %c0_24 = arith.constant 0 : index
    %c0_25 = arith.constant 0 : index
    %50 = vector.load %arg10[%c0_22, %c2_23, %c0_24, %c0_25] : memref<1x4x8x1xf32, #tpu.memory_space<vmem>>, vector<1x1x8x1xf32>
    %51 = vector.shape_cast %50 : vector<1x1x8x1xf32> to vector<1x8x1xf32>
    %52 = vector.shape_cast %49 : vector<1x8x1xf32> to vector<1x1x8x1xf32>
    tpu.vector_store %arg10[%c0_22, %c2_23, %c0_24, %c0_25], %52 {strides = array<i32>} : memref<1x4x8x1xf32, #tpu.memory_space<vmem>>, vector<1x1x8x1xf32>,
    %53 = vector.extract_strided_slice %22 {offsets = [0, 3, 0, 5], sizes = [1, 1, 8, 1], strides = [1, 1, 1, 1]} : vector<1x4x8x6xf32> to vector<1x1x8x1xf32>
    %54 = vector.shape_cast %53 : vector<1x1x8x1xf32> to vector<1x8x1xf32>
    %55 = vector.broadcast %1 : f32 to vector<1x8x1xf32>
    %56 = arith.mulf %54, %55 : vector<1x8x1xf32>
    %c3 = arith.constant 3 : index
    %57 = memref.load %arg6[%c3] : memref<4xf32, #tpu.memory_space<smem>>
    %58 = vector.broadcast %57 : f32 to vector<1x8x1xf32>
    %59 = arith.addf %56, %58 : vector<1x8x1xf32>
    %c0_26 = arith.constant 0 : index
    %c3_27 = arith.constant 3 : index
    %c0_28 = arith.constant 0 : index
    %c0_29 = arith.constant 0 : index
    %60 = vector.load %arg10[%c0_26, %c3_27, %c0_28, %c0_29] : memref<1x4x8x1xf32, #tpu.memory_space<vmem>>, vector<1x1x8x1xf32>
    %61 = vector.shape_cast %60 : vector<1x1x8x1xf32> to vector<1x8x1xf32>
    %62 = vector.shape_cast %59 : vector<1x8x1xf32> to vector<1x1x8x1xf32>
    tpu.vector_store %arg10[%c0_26, %c3_27, %c0_28, %c0_29], %62 {strides = array<i32>} : memref<1x4x8x1xf32, #tpu.memory_space<vmem>>, vector<1x1x8x1xf32>,
    %63 = vector.extract_strided_slice %22 {offsets = [0, 0, 0, 0], sizes = [1, 1, 8, 1], strides = [1, 1, 1, 1]} : vector<1x4x8x6xf32> to vector<1x1x8x1xf32>
    %64 = vector.shape_cast %63 : vector<1x1x8x1xf32> to vector<1x8x1xf32>
    %65 = vector.broadcast %0 : f32 to vector<1x8x1xf32>
    %66 = arith.mulf %64, %65 : vector<1x8x1xf32>
    %c0_30 = arith.constant 0 : index
    %c0_31 = arith.constant 0 : index
    %67 = memref.load %arg5[%c0_30, %c0_31] : memref<4x5xf32, #tpu.memory_space<smem>>
    %68 = vector.broadcast %67 : f32 to vector<1x8x1xf32>
    %69 = arith.addf %66, %68 : vector<1x8x1xf32>
    %70 = vector.extract_strided_slice %2 {offsets = [0, 0, 0, 0], sizes = [1, 1, 8, 32], strides = [1, 1, 1, 1]} : vector<1x4x8x32xf32> to vector<1x1x8x32xf32>
    %71 = vector.shape_cast %70 : vector<1x1x8x32xf32> to vector<1x8x32xf32>
    %72 = vector.broadcast %69 : vector<1x8x1xf32> to vector<1x8x32xf32>
    %73 = arith.mulf %72, %71 : vector<1x8x32xf32>
    %74 = vector.extract_strided_slice %22 {offsets = [0, 1, 0, 0], sizes = [1, 1, 8, 1], strides = [1, 1, 1, 1]} : vector<1x4x8x6xf32> to vector<1x1x8x1xf32>
    %75 = vector.shape_cast %74 : vector<1x1x8x1xf32> to vector<1x8x1xf32>
    %76 = vector.broadcast %0 : f32 to vector<1x8x1xf32>
    %77 = arith.mulf %75, %76 : vector<1x8x1xf32>
    %c1_32 = arith.constant 1 : index
    %c0_33 = arith.constant 0 : index
    %78 = memref.load %arg5[%c1_32, %c0_33] : memref<4x5xf32, #tpu.memory_space<smem>>
    %79 = vector.broadcast %78 : f32 to vector<1x8x1xf32>
    %80 = arith.addf %77, %79 : vector<1x8x1xf32>
    %81 = vector.extract_strided_slice %2 {offsets = [0, 1, 0, 0], sizes = [1, 1, 8, 32], strides = [1, 1, 1, 1]} : vector<1x4x8x32xf32> to vector<1x1x8x32xf32>
    %82 = vector.shape_cast %81 : vector<1x1x8x32xf32> to vector<1x8x32xf32>
    %83 = vector.broadcast %80 : vector<1x8x1xf32> to vector<1x8x32xf32>
    %84 = arith.mulf %83, %82 : vector<1x8x32xf32>
    %85 = arith.addf %73, %84 : vector<1x8x32xf32>
    %86 = vector.extract_strided_slice %22 {offsets = [0, 2, 0, 0], sizes = [1, 1, 8, 1], strides = [1, 1, 1, 1]} : vector<1x4x8x6xf32> to vector<1x1x8x1xf32>
    %87 = vector.shape_cast %86 : vector<1x1x8x1xf32> to vector<1x8x1xf32>
    %88 = vector.broadcast %0 : f32 to vector<1x8x1xf32>
    %89 = arith.mulf %87, %88 : vector<1x8x1xf32>
    %c2_34 = arith.constant 2 : index
    %c0_35 = arith.constant 0 : index
    %90 = memref.load %arg5[%c2_34, %c0_35] : memref<4x5xf32, #tpu.memory_space<smem>>
    %91 = vector.broadcast %90 : f32 to vector<1x8x1xf32>
    %92 = arith.addf %89, %91 : vector<1x8x1xf32>
    %93 = vector.extract_strided_slice %2 {offsets = [0, 2, 0, 0], sizes = [1, 1, 8, 32], strides = [1, 1, 1, 1]} : vector<1x4x8x32xf32> to vector<1x1x8x32xf32>
    %94 = vector.shape_cast %93 : vector<1x1x8x32xf32> to vector<1x8x32xf32>
    %95 = vector.broadcast %92 : vector<1x8x1xf32> to vector<1x8x32xf32>
    %96 = arith.mulf %95, %94 : vector<1x8x32xf32>
    %97 = arith.addf %85, %96 : vector<1x8x32xf32>
    %98 = vector.extract_strided_slice %22 {offsets = [0, 3, 0, 0], sizes = [1, 1, 8, 1], strides = [1, 1, 1, 1]} : vector<1x4x8x6xf32> to vector<1x1x8x1xf32>
    %99 = vector.shape_cast %98 : vector<1x1x8x1xf32> to vector<1x8x1xf32>
    %100 = vector.broadcast %0 : f32 to vector<1x8x1xf32>
    %101 = arith.mulf %99, %100 : vector<1x8x1xf32>
    %c3_36 = arith.constant 3 : index
    %c0_37 = arith.constant 0 : index
    %102 = memref.load %arg5[%c3_36, %c0_37] : memref<4x5xf32, #tpu.memory_space<smem>>
    %103 = vector.broadcast %102 : f32 to vector<1x8x1xf32>
    %104 = arith.addf %101, %103 : vector<1x8x1xf32>
    %105 = vector.extract_strided_slice %2 {offsets = [0, 3, 0, 0], sizes = [1, 1, 8, 32], strides = [1, 1, 1, 1]} : vector<1x4x8x32xf32> to vector<1x1x8x32xf32>
    %106 = vector.shape_cast %105 : vector<1x1x8x32xf32> to vector<1x8x32xf32>
    %107 = vector.broadcast %104 : vector<1x8x1xf32> to vector<1x8x32xf32>
    %108 = arith.mulf %107, %106 : vector<1x8x32xf32>
    %109 = arith.addf %97, %108 : vector<1x8x32xf32>
    %c0_38 = arith.constant 0 : index
    %c0_39 = arith.constant 0 : index
    %c0_40 = arith.constant 0 : index
    %110 = vector.load %arg8[%c0_38, %c0_39, %c0_40] : memref<1x8x32xf32, #tpu.memory_space<vmem>>, vector<1x8x32xf32>
    tpu.vector_store %arg8[%c0_38, %c0_39, %c0_40], %109 {strides = array<i32>} : memref<1x8x32xf32, #tpu.memory_space<vmem>>, vector<1x8x32xf32>,
    %111 = vector.extract_strided_slice %22 {offsets = [0, 0, 0, 1], sizes = [1, 1, 8, 1], strides = [1, 1, 1, 1]} : vector<1x4x8x6xf32> to vector<1x1x8x1xf32>
    %112 = vector.shape_cast %111 : vector<1x1x8x1xf32> to vector<1x8x1xf32>
    %113 = vector.broadcast %0 : f32 to vector<1x8x1xf32>
    %114 = arith.mulf %112, %113 : vector<1x8x1xf32>
    %c0_41 = arith.constant 0 : index
    %c1_42 = arith.constant 1 : index
    %115 = memref.load %arg5[%c0_41, %c1_42] : memref<4x5xf32, #tpu.memory_space<smem>>
    %116 = vector.broadcast %115 : f32 to vector<1x8x1xf32>
    %117 = arith.addf %114, %116 : vector<1x8x1xf32>
    %118 = vector.extract_strided_slice %2 {offsets = [0, 0, 0, 0], sizes = [1, 1, 8, 32], strides = [1, 1, 1, 1]} : vector<1x4x8x32xf32> to vector<1x1x8x32xf32>
    %119 = vector.shape_cast %118 : vector<1x1x8x32xf32> to vector<1x8x32xf32>
    %120 = vector.broadcast %117 : vector<1x8x1xf32> to vector<1x8x32xf32>
    %121 = arith.mulf %120, %119 : vector<1x8x32xf32>
    %122 = vector.extract_strided_slice %22 {offsets = [0, 1, 0, 1], sizes = [1, 1, 8, 1], strides = [1, 1, 1, 1]} : vector<1x4x8x6xf32> to vector<1x1x8x1xf32>
    %123 = vector.shape_cast %122 : vector<1x1x8x1xf32> to vector<1x8x1xf32>
    %124 = vector.broadcast %0 : f32 to vector<1x8x1xf32>
    %125 = arith.mulf %123, %124 : vector<1x8x1xf32>
    %c1_43 = arith.constant 1 : index
    %c1_44 = arith.constant 1 : index
    %126 = memref.load %arg5[%c1_43, %c1_44] : memref<4x5xf32, #tpu.memory_space<smem>>
    %127 = vector.broadcast %126 : f32 to vector<1x8x1xf32>
    %128 = arith.addf %125, %127 : vector<1x8x1xf32>
    %129 = vector.extract_strided_slice %2 {offsets = [0, 1, 0, 0], sizes = [1, 1, 8, 32], strides = [1, 1, 1, 1]} : vector<1x4x8x32xf32> to vector<1x1x8x32xf32>
    %130 = vector.shape_cast %129 : vector<1x1x8x32xf32> to vector<1x8x32xf32>
    %131 = vector.broadcast %128 : vector<1x8x1xf32> to vector<1x8x32xf32>
    %132 = arith.mulf %131, %130 : vector<1x8x32xf32>
    %133 = arith.addf %121, %132 : vector<1x8x32xf32>
    %134 = vector.extract_strided_slice %22 {offsets = [0, 2, 0, 1], sizes = [1, 1, 8, 1], strides = [1, 1, 1, 1]} : vector<1x4x8x6xf32> to vector<1x1x8x1xf32>
    %135 = vector.shape_cast %134 : vector<1x1x8x1xf32> to vector<1x8x1xf32>
    %136 = vector.broadcast %0 : f32 to vector<1x8x1xf32>
    %137 = arith.mulf %135, %136 : vector<1x8x1xf32>
    %c2_45 = arith.constant 2 : index
    %c1_46 = arith.constant 1 : index
    %138 = memref.load %arg5[%c2_45, %c1_46] : memref<4x5xf32, #tpu.memory_space<smem>>
    %139 = vector.broadcast %138 : f32 to vector<1x8x1xf32>
    %140 = arith.addf %137, %139 : vector<1x8x1xf32>
    %141 = vector.extract_strided_slice %2 {offsets = [0, 2, 0, 0], sizes = [1, 1, 8, 32], strides = [1, 1, 1, 1]} : vector<1x4x8x32xf32> to vector<1x1x8x32xf32>
    %142 = vector.shape_cast %141 : vector<1x1x8x32xf32> to vector<1x8x32xf32>
    %143 = vector.broadcast %140 : vector<1x8x1xf32> to vector<1x8x32xf32>
    %144 = arith.mulf %143, %142 : vector<1x8x32xf32>
    %145 = arith.addf %133, %144 : vector<1x8x32xf32>
    %146 = vector.extract_strided_slice %22 {offsets = [0, 3, 0, 1], sizes = [1, 1, 8, 1], strides = [1, 1, 1, 1]} : vector<1x4x8x6xf32> to vector<1x1x8x1xf32>
    %147 = vector.shape_cast %146 : vector<1x1x8x1xf32> to vector<1x8x1xf32>
    %148 = vector.broadcast %0 : f32 to vector<1x8x1xf32>
    %149 = arith.mulf %147, %148 : vector<1x8x1xf32>
    %c3_47 = arith.constant 3 : index
    %c1_48 = arith.constant 1 : index
    %150 = memref.load %arg5[%c3_47, %c1_48] : memref<4x5xf32, #tpu.memory_space<smem>>
    %151 = vector.broadcast %150 : f32 to vector<1x8x1xf32>
    %152 = arith.addf %149, %151 : vector<1x8x1xf32>
    %153 = vector.extract_strided_slice %2 {offsets = [0, 3, 0, 0], sizes = [1, 1, 8, 32], strides = [1, 1, 1, 1]} : vector<1x4x8x32xf32> to vector<1x1x8x32xf32>
    %154 = vector.shape_cast %153 : vector<1x1x8x32xf32> to vector<1x8x32xf32>
    %155 = vector.broadcast %152 : vector<1x8x1xf32> to vector<1x8x32xf32>
    %156 = arith.mulf %155, %154 : vector<1x8x32xf32>
    %157 = arith.addf %145, %156 : vector<1x8x32xf32>
    %c0_49 = arith.constant 0 : index
    %c0_50 = arith.constant 0 : index
    %c0_51 = arith.constant 0 : index
    %c0_52 = arith.constant 0 : index
    %158 = vector.load %arg9[%c0_49, %c0_50, %c0_51, %c0_52] : memref<1x4x8x32xf32, #tpu.memory_space<vmem>>, vector<1x1x8x32xf32>
    %159 = vector.shape_cast %158 : vector<1x1x8x32xf32> to vector<1x8x32xf32>
    %160 = vector.shape_cast %157 : vector<1x8x32xf32> to vector<1x1x8x32xf32>
    tpu.vector_store %arg9[%c0_49, %c0_50, %c0_51, %c0_52], %160 {strides = array<i32>} : memref<1x4x8x32xf32, #tpu.memory_space<vmem>>, vector<1x1x8x32xf32>,
    %161 = vector.extract_strided_slice %22 {offsets = [0, 0, 0, 2], sizes = [1, 1, 8, 1], strides = [1, 1, 1, 1]} : vector<1x4x8x6xf32> to vector<1x1x8x1xf32>
    %162 = vector.shape_cast %161 : vector<1x1x8x1xf32> to vector<1x8x1xf32>
    %163 = vector.broadcast %0 : f32 to vector<1x8x1xf32>
    %164 = arith.mulf %162, %163 : vector<1x8x1xf32>
    %c0_53 = arith.constant 0 : index
    %c2_54 = arith.constant 2 : index
    %165 = memref.load %arg5[%c0_53, %c2_54] : memref<4x5xf32, #tpu.memory_space<smem>>
    %166 = vector.broadcast %165 : f32 to vector<1x8x1xf32>
    %167 = arith.addf %164, %166 : vector<1x8x1xf32>
    %168 = vector.extract_strided_slice %2 {offsets = [0, 0, 0, 0], sizes = [1, 1, 8, 32], strides = [1, 1, 1, 1]} : vector<1x4x8x32xf32> to vector<1x1x8x32xf32>
    %169 = vector.shape_cast %168 : vector<1x1x8x32xf32> to vector<1x8x32xf32>
    %170 = vector.broadcast %167 : vector<1x8x1xf32> to vector<1x8x32xf32>
    %171 = arith.mulf %170, %169 : vector<1x8x32xf32>
    %172 = vector.extract_strided_slice %22 {offsets = [0, 1, 0, 2], sizes = [1, 1, 8, 1], strides = [1, 1, 1, 1]} : vector<1x4x8x6xf32> to vector<1x1x8x1xf32>
    %173 = vector.shape_cast %172 : vector<1x1x8x1xf32> to vector<1x8x1xf32>
    %174 = vector.broadcast %0 : f32 to vector<1x8x1xf32>
    %175 = arith.mulf %173, %174 : vector<1x8x1xf32>
    %c1_55 = arith.constant 1 : index
    %c2_56 = arith.constant 2 : index
    %176 = memref.load %arg5[%c1_55, %c2_56] : memref<4x5xf32, #tpu.memory_space<smem>>
    %177 = vector.broadcast %176 : f32 to vector<1x8x1xf32>
    %178 = arith.addf %175, %177 : vector<1x8x1xf32>
    %179 = vector.extract_strided_slice %2 {offsets = [0, 1, 0, 0], sizes = [1, 1, 8, 32], strides = [1, 1, 1, 1]} : vector<1x4x8x32xf32> to vector<1x1x8x32xf32>
    %180 = vector.shape_cast %179 : vector<1x1x8x32xf32> to vector<1x8x32xf32>
    %181 = vector.broadcast %178 : vector<1x8x1xf32> to vector<1x8x32xf32>
    %182 = arith.mulf %181, %180 : vector<1x8x32xf32>
    %183 = arith.addf %171, %182 : vector<1x8x32xf32>
    %184 = vector.extract_strided_slice %22 {offsets = [0, 2, 0, 2], sizes = [1, 1, 8, 1], strides = [1, 1, 1, 1]} : vector<1x4x8x6xf32> to vector<1x1x8x1xf32>
    %185 = vector.shape_cast %184 : vector<1x1x8x1xf32> to vector<1x8x1xf32>
    %186 = vector.broadcast %0 : f32 to vector<1x8x1xf32>
    %187 = arith.mulf %185, %186 : vector<1x8x1xf32>
    %c2_57 = arith.constant 2 : index
    %c2_58 = arith.constant 2 : index
    %188 = memref.load %arg5[%c2_57, %c2_58] : memref<4x5xf32, #tpu.memory_space<smem>>
    %189 = vector.broadcast %188 : f32 to vector<1x8x1xf32>
    %190 = arith.addf %187, %189 : vector<1x8x1xf32>
    %191 = vector.extract_strided_slice %2 {offsets = [0, 2, 0, 0], sizes = [1, 1, 8, 32], strides = [1, 1, 1, 1]} : vector<1x4x8x32xf32> to vector<1x1x8x32xf32>
    %192 = vector.shape_cast %191 : vector<1x1x8x32xf32> to vector<1x8x32xf32>
    %193 = vector.broadcast %190 : vector<1x8x1xf32> to vector<1x8x32xf32>
    %194 = arith.mulf %193, %192 : vector<1x8x32xf32>
    %195 = arith.addf %183, %194 : vector<1x8x32xf32>
    %196 = vector.extract_strided_slice %22 {offsets = [0, 3, 0, 2], sizes = [1, 1, 8, 1], strides = [1, 1, 1, 1]} : vector<1x4x8x6xf32> to vector<1x1x8x1xf32>
    %197 = vector.shape_cast %196 : vector<1x1x8x1xf32> to vector<1x8x1xf32>
    %198 = vector.broadcast %0 : f32 to vector<1x8x1xf32>
    %199 = arith.mulf %197, %198 : vector<1x8x1xf32>
    %c3_59 = arith.constant 3 : index
    %c2_60 = arith.constant 2 : index
    %200 = memref.load %arg5[%c3_59, %c2_60] : memref<4x5xf32, #tpu.memory_space<smem>>
    %201 = vector.broadcast %200 : f32 to vector<1x8x1xf32>
    %202 = arith.addf %199, %201 : vector<1x8x1xf32>
    %203 = vector.extract_strided_slice %2 {offsets = [0, 3, 0, 0], sizes = [1, 1, 8, 32], strides = [1, 1, 1, 1]} : vector<1x4x8x32xf32> to vector<1x1x8x32xf32>
    %204 = vector.shape_cast %203 : vector<1x1x8x32xf32> to vector<1x8x32xf32>
    %205 = vector.broadcast %202 : vector<1x8x1xf32> to vector<1x8x32xf32>
    %206 = arith.mulf %205, %204 : vector<1x8x32xf32>
    %207 = arith.addf %195, %206 : vector<1x8x32xf32>
    %c0_61 = arith.constant 0 : index
    %c1_62 = arith.constant 1 : index
    %c0_63 = arith.constant 0 : index
    %c0_64 = arith.constant 0 : index
    %208 = vector.load %arg9[%c0_61, %c1_62, %c0_63, %c0_64] : memref<1x4x8x32xf32, #tpu.memory_space<vmem>>, vector<1x1x8x32xf32>
    %209 = vector.shape_cast %208 : vector<1x1x8x32xf32> to vector<1x8x32xf32>
    %210 = vector.shape_cast %207 : vector<1x8x32xf32> to vector<1x1x8x32xf32>
    tpu.vector_store %arg9[%c0_61, %c1_62, %c0_63, %c0_64], %210 {strides = array<i32>} : memref<1x4x8x32xf32, #tpu.memory_space<vmem>>, vector<1x1x8x32xf32>,
    %211 = vector.extract_strided_slice %22 {offsets = [0, 0, 0, 3], sizes = [1, 1, 8, 1], strides = [1, 1, 1, 1]} : vector<1x4x8x6xf32> to vector<1x1x8x1xf32>
    %212 = vector.shape_cast %211 : vector<1x1x8x1xf32> to vector<1x8x1xf32>
    %213 = vector.broadcast %0 : f32 to vector<1x8x1xf32>
    %214 = arith.mulf %212, %213 : vector<1x8x1xf32>
    %c0_65 = arith.constant 0 : index
    %c3_66 = arith.constant 3 : index
    %215 = memref.load %arg5[%c0_65, %c3_66] : memref<4x5xf32, #tpu.memory_space<smem>>
    %216 = vector.broadcast %215 : f32 to vector<1x8x1xf32>
    %217 = arith.addf %214, %216 : vector<1x8x1xf32>
    %218 = vector.extract_strided_slice %2 {offsets = [0, 0, 0, 0], sizes = [1, 1, 8, 32], strides = [1, 1, 1, 1]} : vector<1x4x8x32xf32> to vector<1x1x8x32xf32>
    %219 = vector.shape_cast %218 : vector<1x1x8x32xf32> to vector<1x8x32xf32>
    %220 = vector.broadcast %217 : vector<1x8x1xf32> to vector<1x8x32xf32>
    %221 = arith.mulf %220, %219 : vector<1x8x32xf32>
    %222 = vector.extract_strided_slice %22 {offsets = [0, 1, 0, 3], sizes = [1, 1, 8, 1], strides = [1, 1, 1, 1]} : vector<1x4x8x6xf32> to vector<1x1x8x1xf32>
    %223 = vector.shape_cast %222 : vector<1x1x8x1xf32> to vector<1x8x1xf32>
    %224 = vector.broadcast %0 : f32 to vector<1x8x1xf32>
    %225 = arith.mulf %223, %224 : vector<1x8x1xf32>
    %c1_67 = arith.constant 1 : index
    %c3_68 = arith.constant 3 : index
    %226 = memref.load %arg5[%c1_67, %c3_68] : memref<4x5xf32, #tpu.memory_space<smem>>
    %227 = vector.broadcast %226 : f32 to vector<1x8x1xf32>
    %228 = arith.addf %225, %227 : vector<1x8x1xf32>
    %229 = vector.extract_strided_slice %2 {offsets = [0, 1, 0, 0], sizes = [1, 1, 8, 32], strides = [1, 1, 1, 1]} : vector<1x4x8x32xf32> to vector<1x1x8x32xf32>
    %230 = vector.shape_cast %229 : vector<1x1x8x32xf32> to vector<1x8x32xf32>
    %231 = vector.broadcast %228 : vector<1x8x1xf32> to vector<1x8x32xf32>
    %232 = arith.mulf %231, %230 : vector<1x8x32xf32>
    %233 = arith.addf %221, %232 : vector<1x8x32xf32>
    %234 = vector.extract_strided_slice %22 {offsets = [0, 2, 0, 3], sizes = [1, 1, 8, 1], strides = [1, 1, 1, 1]} : vector<1x4x8x6xf32> to vector<1x1x8x1xf32>
    %235 = vector.shape_cast %234 : vector<1x1x8x1xf32> to vector<1x8x1xf32>
    %236 = vector.broadcast %0 : f32 to vector<1x8x1xf32>
    %237 = arith.mulf %235, %236 : vector<1x8x1xf32>
    %c2_69 = arith.constant 2 : index
    %c3_70 = arith.constant 3 : index
    %238 = memref.load %arg5[%c2_69, %c3_70] : memref<4x5xf32, #tpu.memory_space<smem>>
    %239 = vector.broadcast %238 : f32 to vector<1x8x1xf32>
    %240 = arith.addf %237, %239 : vector<1x8x1xf32>
    %241 = vector.extract_strided_slice %2 {offsets = [0, 2, 0, 0], sizes = [1, 1, 8, 32], strides = [1, 1, 1, 1]} : vector<1x4x8x32xf32> to vector<1x1x8x32xf32>
    %242 = vector.shape_cast %241 : vector<1x1x8x32xf32> to vector<1x8x32xf32>
    %243 = vector.broadcast %240 : vector<1x8x1xf32> to vector<1x8x32xf32>
    %244 = arith.mulf %243, %242 : vector<1x8x32xf32>
    %245 = arith.addf %233, %244 : vector<1x8x32xf32>
    %246 = vector.extract_strided_slice %22 {offsets = [0, 3, 0, 3], sizes = [1, 1, 8, 1], strides = [1, 1, 1, 1]} : vector<1x4x8x6xf32> to vector<1x1x8x1xf32>
    %247 = vector.shape_cast %246 : vector<1x1x8x1xf32> to vector<1x8x1xf32>
    %248 = vector.broadcast %0 : f32 to vector<1x8x1xf32>
    %249 = arith.mulf %247, %248 : vector<1x8x1xf32>
    %c3_71 = arith.constant 3 : index
    %c3_72 = arith.constant 3 : index
    %250 = memref.load %arg5[%c3_71, %c3_72] : memref<4x5xf32, #tpu.memory_space<smem>>
    %251 = vector.broadcast %250 : f32 to vector<1x8x1xf32>
    %252 = arith.addf %249, %251 : vector<1x8x1xf32>
    %253 = vector.extract_strided_slice %2 {offsets = [0, 3, 0, 0], sizes = [1, 1, 8, 32], strides = [1, 1, 1, 1]} : vector<1x4x8x32xf32> to vector<1x1x8x32xf32>
    %254 = vector.shape_cast %253 : vector<1x1x8x32xf32> to vector<1x8x32xf32>
    %255 = vector.broadcast %252 : vector<1x8x1xf32> to vector<1x8x32xf32>
    %256 = arith.mulf %255, %254 : vector<1x8x32xf32>
    %257 = arith.addf %245, %256 : vector<1x8x32xf32>
    %c0_73 = arith.constant 0 : index
    %c2_74 = arith.constant 2 : index
    %c0_75 = arith.constant 0 : index
    %c0_76 = arith.constant 0 : index
    %258 = vector.load %arg9[%c0_73, %c2_74, %c0_75, %c0_76] : memref<1x4x8x32xf32, #tpu.memory_space<vmem>>, vector<1x1x8x32xf32>
    %259 = vector.shape_cast %258 : vector<1x1x8x32xf32> to vector<1x8x32xf32>
    %260 = vector.shape_cast %257 : vector<1x8x32xf32> to vector<1x1x8x32xf32>
    tpu.vector_store %arg9[%c0_73, %c2_74, %c0_75, %c0_76], %260 {strides = array<i32>} : memref<1x4x8x32xf32, #tpu.memory_space<vmem>>, vector<1x1x8x32xf32>,
    %261 = vector.extract_strided_slice %22 {offsets = [0, 0, 0, 4], sizes = [1, 1, 8, 1], strides = [1, 1, 1, 1]} : vector<1x4x8x6xf32> to vector<1x1x8x1xf32>
    %262 = vector.shape_cast %261 : vector<1x1x8x1xf32> to vector<1x8x1xf32>
    %263 = vector.broadcast %0 : f32 to vector<1x8x1xf32>
    %264 = arith.mulf %262, %263 : vector<1x8x1xf32>
    %c0_77 = arith.constant 0 : index
    %c4 = arith.constant 4 : index
    %265 = memref.load %arg5[%c0_77, %c4] : memref<4x5xf32, #tpu.memory_space<smem>>
    %266 = vector.broadcast %265 : f32 to vector<1x8x1xf32>
    %267 = arith.addf %264, %266 : vector<1x8x1xf32>
    %268 = vector.extract_strided_slice %2 {offsets = [0, 0, 0, 0], sizes = [1, 1, 8, 32], strides = [1, 1, 1, 1]} : vector<1x4x8x32xf32> to vector<1x1x8x32xf32>
    %269 = vector.shape_cast %268 : vector<1x1x8x32xf32> to vector<1x8x32xf32>
    %270 = vector.broadcast %267 : vector<1x8x1xf32> to vector<1x8x32xf32>
    %271 = arith.mulf %270, %269 : vector<1x8x32xf32>
    %272 = vector.extract_strided_slice %22 {offsets = [0, 1, 0, 4], sizes = [1, 1, 8, 1], strides = [1, 1, 1, 1]} : vector<1x4x8x6xf32> to vector<1x1x8x1xf32>
    %273 = vector.shape_cast %272 : vector<1x1x8x1xf32> to vector<1x8x1xf32>
    %274 = vector.broadcast %0 : f32 to vector<1x8x1xf32>
    %275 = arith.mulf %273, %274 : vector<1x8x1xf32>
    %c1_78 = arith.constant 1 : index
    %c4_79 = arith.constant 4 : index
    %276 = memref.load %arg5[%c1_78, %c4_79] : memref<4x5xf32, #tpu.memory_space<smem>>
    %277 = vector.broadcast %276 : f32 to vector<1x8x1xf32>
    %278 = arith.addf %275, %277 : vector<1x8x1xf32>
    %279 = vector.extract_strided_slice %2 {offsets = [0, 1, 0, 0], sizes = [1, 1, 8, 32], strides = [1, 1, 1, 1]} : vector<1x4x8x32xf32> to vector<1x1x8x32xf32>
    %280 = vector.shape_cast %279 : vector<1x1x8x32xf32> to vector<1x8x32xf32>
    %281 = vector.broadcast %278 : vector<1x8x1xf32> to vector<1x8x32xf32>
    %282 = arith.mulf %281, %280 : vector<1x8x32xf32>
    %283 = arith.addf %271, %282 : vector<1x8x32xf32>
    %284 = vector.extract_strided_slice %22 {offsets = [0, 2, 0, 4], sizes = [1, 1, 8, 1], strides = [1, 1, 1, 1]} : vector<1x4x8x6xf32> to vector<1x1x8x1xf32>
    %285 = vector.shape_cast %284 : vector<1x1x8x1xf32> to vector<1x8x1xf32>
    %286 = vector.broadcast %0 : f32 to vector<1x8x1xf32>
    %287 = arith.mulf %285, %286 : vector<1x8x1xf32>
    %c2_80 = arith.constant 2 : index
    %c4_81 = arith.constant 4 : index
    %288 = memref.load %arg5[%c2_80, %c4_81] : memref<4x5xf32, #tpu.memory_space<smem>>
    %289 = vector.broadcast %288 : f32 to vector<1x8x1xf32>
    %290 = arith.addf %287, %289 : vector<1x8x1xf32>
    %291 = vector.extract_strided_slice %2 {offsets = [0, 2, 0, 0], sizes = [1, 1, 8, 32], strides = [1, 1, 1, 1]} : vector<1x4x8x32xf32> to vector<1x1x8x32xf32>
    %292 = vector.shape_cast %291 : vector<1x1x8x32xf32> to vector<1x8x32xf32>
    %293 = vector.broadcast %290 : vector<1x8x1xf32> to vector<1x8x32xf32>
    %294 = arith.mulf %293, %292 : vector<1x8x32xf32>
    %295 = arith.addf %283, %294 : vector<1x8x32xf32>
    %296 = vector.extract_strided_slice %22 {offsets = [0, 3, 0, 4], sizes = [1, 1, 8, 1], strides = [1, 1, 1, 1]} : vector<1x4x8x6xf32> to vector<1x1x8x1xf32>
    %297 = vector.shape_cast %296 : vector<1x1x8x1xf32> to vector<1x8x1xf32>
    %298 = vector.broadcast %0 : f32 to vector<1x8x1xf32>
    %299 = arith.mulf %297, %298 : vector<1x8x1xf32>
    %c3_82 = arith.constant 3 : index
    %c4_83 = arith.constant 4 : index
    %300 = memref.load %arg5[%c3_82, %c4_83] : memref<4x5xf32, #tpu.memory_space<smem>>
    %301 = vector.broadcast %300 : f32 to vector<1x8x1xf32>
    %302 = arith.addf %299, %301 : vector<1x8x1xf32>
    %303 = vector.extract_strided_slice %2 {offsets = [0, 3, 0, 0], sizes = [1, 1, 8, 32], strides = [1, 1, 1, 1]} : vector<1x4x8x32xf32> to vector<1x1x8x32xf32>
    %304 = vector.shape_cast %303 : vector<1x1x8x32xf32> to vector<1x8x32xf32>
    %305 = vector.broadcast %302 : vector<1x8x1xf32> to vector<1x8x32xf32>
    %306 = arith.mulf %305, %304 : vector<1x8x32xf32>
    %307 = arith.addf %295, %306 : vector<1x8x32xf32>
    %c0_84 = arith.constant 0 : index
    %c3_85 = arith.constant 3 : index
    %c0_86 = arith.constant 0 : index
    %c0_87 = arith.constant 0 : index
    %308 = vector.load %arg9[%c0_84, %c3_85, %c0_86, %c0_87] : memref<1x4x8x32xf32, #tpu.memory_space<vmem>>, vector<1x1x8x32xf32>
    %309 = vector.shape_cast %308 : vector<1x1x8x32xf32> to vector<1x8x32xf32>
    %310 = vector.shape_cast %307 : vector<1x8x32xf32> to vector<1x1x8x32xf32>
    tpu.vector_store %arg9[%c0_84, %c3_85, %c0_86, %c0_87], %310 {strides = array<i32>} : memref<1x4x8x32xf32, #tpu.memory_space<vmem>>, vector<1x1x8x32xf32>,
    return
  }
  func.func @transform_0(%arg0: i32, %arg1: i32) -> (i32, i32, i32, i32) {
    %c0_i32 = arith.constant 0 : i32
    %c0_i32_0 = arith.constant 0 : i32
    %c0_i32_1 = arith.constant 0 : i32
    return %arg0, %c0_i32, %arg1, %c0_i32_0 : i32, i32, i32, i32
  }
  func.func @transform_1(%arg0: i32, %arg1: i32) -> (i32, i32) {
    %c0_i32 = arith.constant 0 : i32
    %c0_i32_0 = arith.constant 0 : i32
    %c0_i32_1 = arith.constant 0 : i32
    return %c0_i32, %c0_i32_0 : i32, i32
  }
  func.func @transform_2(%arg0: i32, %arg1: i32) -> (i32, i32) {
    %c0_i32 = arith.constant 0 : i32
    %c0_i32_0 = arith.constant 0 : i32
    %c0_i32_1 = arith.constant 0 : i32
    return %c0_i32, %c0_i32_0 : i32, i32
  }
  func.func @transform_3(%arg0: i32, %arg1: i32) -> (i32, i32) {
    %c0_i32 = arith.constant 0 : i32
    %c0_i32_0 = arith.constant 0 : i32
    %c0_i32_1 = arith.constant 0 : i32
    return %c0_i32, %c0_i32_0 : i32, i32
  }
  func.func @transform_4(%arg0: i32, %arg1: i32) -> i32 {
    %c0_i32 = arith.constant 0 : i32
    %c0_i32_0 = arith.constant 0 : i32
    return %c0_i32 : i32
  }
  func.func @transform_5(%arg0: i32, %arg1: i32) -> i32 {
    %c0_i32 = arith.constant 0 : i32
    %c0_i32_0 = arith.constant 0 : i32
    return %c0_i32 : i32
  }
  func.func @transform_6(%arg0: i32, %arg1: i32) -> (i32, i32, i32) {
    %c0_i32 = arith.constant 0 : i32
    %c0_i32_0 = arith.constant 0 : i32
    return %arg0, %arg1, %c0_i32 : i32, i32, i32
  }
  func.func @transform_7(%arg0: i32, %arg1: i32) -> (i32, i32, i32, i32) {
    %c0_i32 = arith.constant 0 : i32
    %c0_i32_0 = arith.constant 0 : i32
    %c0_i32_1 = arith.constant 0 : i32
    return %arg0, %c0_i32, %arg1, %c0_i32_0 : i32, i32, i32, i32
  }
  func.func @transform_8(%arg0: i32, %arg1: i32) -> (i32, i32, i32, i32) {
    %c0_i32 = arith.constant 0 : i32
    %c0_i32_0 = arith.constant 0 : i32
    %c0_i32_1 = arith.constant 0 : i32
    return %arg0, %c0_i32, %arg1, %c0_i32_0 : i32, i32, i32, i32
  }
}

</mosaic_0001>

<llo_original>
// kernel: tpu_custom_call.1
$region0: #{tpu_custom_call.1}
  #allocation0 [shape = 'u32[]', space=smem, size = 0x4, offset = 0x4, fixed_abs, tag = 'smem constant byte address 0x4 - core index']
  #allocation1 [shape = 'u32[144,128]{1,0:T(1,128)}', space=vmem, size = 0x12000, scoped, tag = 'internal scratch']
  %s0 = inlined_call_operand.hbm [shape: f32[2,4,8,32], index: 0, kind: input, shape index: {}]
  %s1 = inlined_call_operand.vmem [shape: f32[1,32], index: 1, kind: input, shape index: {}]
  %s2 = inlined_call_operand.vmem [shape: f32[32,6], index: 2, kind: input, shape index: {}]
  %s3 = inlined_call_operand.vmem [shape: f32[4,5], index: 3, kind: input, shape index: {}]
  %s4 = inlined_call_operand.vmem [shape: f32[4], index: 4, kind: input, shape index: {}]
  %s5 = inlined_call_operand.vmem [shape: f32[2], index: 5, kind: input, shape index: {}]
  %s6 = inlined_call_operand.hbm [shape: f32[2,8,32], index: 6, kind: output, shape index: {0}]
  %s7 = inlined_call_operand.hbm [shape: f32[2,4,8,32], index: 7, kind: output, shape index: {1}]
  %s8 = inlined_call_operand.vmem [shape: f32[2,4,8,1], index: 8, kind: output, shape index: {2}]
  %9 = xla_tuple %s6, %s7, %s8
  %s10 = sld [smem:[#allocation0]]
  $region89: #{tpu_custom_call.1} parent=0
    _
  %s12 = ssub.s32 1, %s10
  %s13 = scalar_select 0, %s12, %s10
  $region1: #{tpu_custom_call.1} parent=0
    #allocation2 [shape = 'u8[32768]{0}', space=vmem, size = 0x8000, scoped, tag = 'input window, operand 0']
    #allocation3 [shape = 's32[2]{0}', space=sflag, size = 0x8, scoped, tag = 'scoped memory for tpu_custom_call.1']
    #allocation4 [shape = 's32[2]{0}', space=sflag, size = 0x8, scoped, tag = 'scoped memory for tpu_custom_call.1']
    #allocation5 [shape = 's32[2]{0}', space=sflag, size = 0x8, scoped, tag = 'scoped memory for tpu_custom_call.1']
    #allocation6 [shape = 'u8[2048]{0}', space=smem, size = 0x800, scoped, tag = 'input window, operand 3, single buffered']
    #allocation7 [shape = 'u8[512]{0}', space=smem, size = 0x200, scoped, tag = 'input window, operand 4, single buffered']
    #allocation8 [shape = 's32[1]{0}', space=sflag, size = 0x4, scoped, tag = 'scoped memory for tpu_custom_call.1']
    #allocation9 [shape = 'u8[512]{0}', space=smem, size = 0x200, scoped, tag = 'input window, operand 5, single buffered']
    #allocation10 [shape = 'u8[8192]{0}', space=vmem, size = 0x2000, scoped, tag = 'output window, operand 0']
    #allocation11 [shape = 'u8[32768]{0}', space=vmem, size = 0x8000, scoped, tag = 'output window, operand 1']
    #allocation12 [shape = 's32[2]{0}', space=sflag, size = 0x8, scoped, tag = 'scoped memory for tpu_custom_call.1']
    %14 = vsyncpa [#allocation3], 0
    %s15 = scalar_lea.sflag [#allocation3], 1
    %16 = vsyncpa %s15, 0
    %17 = vsyncpa [#allocation5], 0
    %18 = vsyncpa [#allocation8], 0
    %19 = vsyncpa [#allocation4], 0
    %s20 = scalar_lea.sflag [#allocation4], 1
    %21 = vsyncpa %s20, 0
    %22 = vsyncpa [#allocation12], 0
    %s23 = scalar_lea.sflag [#allocation12], 1
    %24 = vsyncpa %s23, 0
    loop: start=0, step=1, limit=4
    $region2: #{tpu_custom_call.1} parent=1 // loop_pre_header
      _
    $region3: #{tpu_custom_call.1} parent=1 // loop_header
      %s26 = sphi 0, %s30
      %p27 = scmp.ge.s32.totalorder %s26, 4
      %s33 = sphi 0, %s45
      %s34 = sphi 0, %s41
      %s35 = sphi 0, %s33
      %s36 = sphi 0, %s34
      %s37 = sphi 0, %s35
      %s38 = sphi 0, %s36
      %s50 = sphi 0, %s52
      %s53 = sphi 0, %s50
      %s54 = sphi 0, %s53
      %s70 = sphi 0, %s54
      %s74 = sphi 0, %s74
      %s76 = sphi 0, %s74
      %s77 = sphi 0, %s76
      %s91 = sphi 0, %s77
      %s95 = sphi 0, %s95
      %s97 = sphi 0, %s95
      %s98 = sphi 0, %s97
      %s112 = sphi 0, %s98
      %s116 = sphi 0, %s116
      %s118 = sphi 0, %s116
      %s119 = sphi 0, %s118
      %s133 = sphi 0, %s119
      %s137 = sphi 0, %s137
      %s139 = sphi 0, %s137
      %s140 = sphi 0, %s139
      %s154 = sphi 0, %s140
      %s158 = sphi 0, %s158
      %s160 = sphi 0, %s158
      %s161 = sphi 0, %s160
      %s175 = sphi 0, %s161
      %s183 = sphi 0, %s185
      %s186 = sphi 0, %s183
      %s187 = sphi 0, %s186
      %s203 = sphi 0, %s187
      %s211 = sphi 0, %s213
      %s214 = sphi 0, %s211
      %s215 = sphi 0, %s214
      %s231 = sphi 0, %s215
      %s239 = sphi 0, %s241
      %s242 = sphi 0, %s239
      %s243 = sphi 0, %s242
      %s259 = sphi 0, %s243
    $region4: #{tpu_custom_call.1} parent=1 // loop_header_branch
      %29 = sbr.rel (%p27) target = $region8
    $region5: #{tpu_custom_call.1} parent=1 // loop_body
      %s31 = ssub.s32 %s26, 1
      %s32 = ssub.s32 %s26, 2
      %s39 = sadd.s32 1, %s34
      %p40 = scmp.ge.s32.totalorder %s39, 1
      %s41 = scalar_select %p40, 0, %s39
      %s42 = sadd.s32 1, %s33
      %s43 = scalar_select %p40, %s42, %s33
      %p44 = scmp.ge.s32.totalorder %s43, 2
      %s45 = scalar_select %p44, 0, %s43
      %s46 = ssub.s32 %s33, %s45
      %s47 = ssub.s32 %s34, %s41
      %s48 = sor.u32 %s46, %s47
      %p49 = scmp.eq.s32.totalorder %s48, 0
      %s51 = sadd.s32 %s50, 1
      %s52 = scalar_select %p49, %s50, %s51
      %p55 = pneg %p49
      %p56 = scmp.eq.s32.totalorder %s26, 1
      %p57 = por %p55, %p56
      %p58 = scmp.ne.s32.totalorder %s50, %s53
      %p59 = scmp.eq.s32.totalorder %s26, 0
      %p60 = por %p58, %p59
      %p61 = scmp.ne.s32.totalorder %s50, %s53
      %p62 = scmp.eq.s32.totalorder %s31, 1
      %p63 = por %p61, %p62
      %p64 = scmp.ne.s32.totalorder %s53, %s54
      %p65 = scmp.eq.s32.totalorder %s31, 0
      %p66 = por %p64, %p65
      %p67 = scmp.ne.s32.totalorder %s53, %s54
      %p68 = scmp.eq.s32.totalorder %s32, 1
      %p69 = por %p67, %p68
      %p71 = scmp.ne.s32.totalorder %s54, %s70
      %p72 = scmp.eq.s32.totalorder %s32, 0
      %p73 = por %p71, %p72
      %s75 = sadd.s32 %s74, 1
      %p78 = scmp.eq.s32.totalorder %s26, 1
      %p79 = scmp.ne.s32.totalorder %s74, %s76
      %p80 = scmp.eq.s32.totalorder %s26, 0
      %p81 = por %p79, %p80
      %p82 = scmp.ne.s32.totalorder %s74, %s76
      %p83 = scmp.eq.s32.totalorder %s31, 1
      %p84 = por %p82, %p83
      %p85 = scmp.ne.s32.totalorder %s76, %s77
      %p86 = scmp.eq.s32.totalorder %s31, 0
      %p87 = por %p85, %p86
      %p88 = scmp.ne.s32.totalorder %s76, %s77
      %p89 = scmp.eq.s32.totalorder %s32, 1
      %p90 = por %p88, %p89
      %p92 = scmp.ne.s32.totalorder %s77, %s91
      %p93 = scmp.eq.s32.totalorder %s32, 0
      %p94 = por %p92, %p93
      %s96 = sadd.s32 %s95, 1
      %p99 = scmp.eq.s32.totalorder %s26, 1
      %p100 = scmp.ne.s32.totalorder %s95, %s97
      %p101 = scmp.eq.s32.totalorder %s26, 0
      %p102 = por %p100, %p101
      %p103 = scmp.ne.s32.totalorder %s95, %s97
      %p104 = scmp.eq.s32.totalorder %s31, 1
      %p105 = por %p103, %p104
      %p106 = scmp.ne.s32.totalorder %s97, %s98
      %p107 = scmp.eq.s32.totalorder %s31, 0
      %p108 = por %p106, %p107
      %p109 = scmp.ne.s32.totalorder %s97, %s98
      %p110 = scmp.eq.s32.totalorder %s32, 1
      %p111 = por %p109, %p110
      %p113 = scmp.ne.s32.totalorder %s98, %s112
      %p114 = scmp.eq.s32.totalorder %s32, 0
      %p115 = por %p113, %p114
      %s117 = sadd.s32 %s116, 1
      %p120 = scmp.eq.s32.totalorder %s26, 1
      %p121 = scmp.ne.s32.totalorder %s116, %s118
      %p122 = scmp.eq.s32.totalorder %s26, 0
      %p123 = por %p121, %p122
      %p124 = scmp.ne.s32.totalorder %s116, %s118
      %p125 = scmp.eq.s32.totalorder %s31, 1
      %p126 = por %p124, %p125
      %p127 = scmp.ne.s32.totalorder %s118, %s119
      %p128 = scmp.eq.s32.totalorder %s31, 0
      %p129 = por %p127, %p128
      %p130 = scmp.ne.s32.totalorder %s118, %s119
      %p131 = scmp.eq.s32.totalorder %s32, 1
      %p132 = por %p130, %p131
      %p134 = scmp.ne.s32.totalorder %s119, %s133
      %p135 = scmp.eq.s32.totalorder %s32, 0
      %p136 = por %p134, %p135
      %s138 = sadd.s32 %s137, 1
      %p141 = scmp.eq.s32.totalorder %s26, 1
      %p142 = scmp.ne.s32.totalorder %s137, %s139
      %p143 = scmp.eq.s32.totalorder %s26, 0
      %p144 = por %p142, %p143
      %p145 = scmp.ne.s32.totalorder %s137, %s139
      %p146 = scmp.eq.s32.totalorder %s31, 1
      %p147 = por %p145, %p146
      %p148 = scmp.ne.s32.totalorder %s139, %s140
      %p149 = scmp.eq.s32.totalorder %s31, 0
      %p150 = por %p148, %p149
      %p151 = scmp.ne.s32.totalorder %s139, %s140
      %p152 = scmp.eq.s32.totalorder %s32, 1
      %p153 = por %p151, %p152
      %p155 = scmp.ne.s32.totalorder %s140, %s154
      %p156 = scmp.eq.s32.totalorder %s32, 0
      %p157 = por %p155, %p156
      %s159 = sadd.s32 %s158, 1
      %p162 = scmp.eq.s32.totalorder %s26, 1
      %p163 = scmp.ne.s32.totalorder %s158, %s160
      %p164 = scmp.eq.s32.totalorder %s26, 0
      %p165 = por %p163, %p164
      %p166 = scmp.ne.s32.totalorder %s158, %s160
      %p167 = scmp.eq.s32.totalorder %s31, 1
      %p168 = por %p166, %p167
      %p169 = scmp.ne.s32.totalorder %s160, %s161
      %p170 = scmp.eq.s32.totalorder %s31, 0
      %p171 = por %p169, %p170
      %p172 = scmp.ne.s32.totalorder %s160, %s161
      %p173 = scmp.eq.s32.totalorder %s32, 1
      %p174 = por %p172, %p173
      %p176 = scmp.ne.s32.totalorder %s161, %s175
      %p177 = scmp.eq.s32.totalorder %s32, 0
      %p178 = por %p176, %p177
      %s179 = ssub.s32 %s33, %s45
      %s180 = ssub.s32 %s34, %s41
      %s181 = sor.u32 %s179, %s180
      %p182 = scmp.eq.s32.totalorder %s181, 0
      %s184 = sadd.s32 %s183, 1
      %s185 = scalar_select %p182, %s183, %s184
      %p188 = pneg %p182
      %p189 = scmp.eq.s32.totalorder %s26, 1
      %p190 = por %p188, %p189
      %p191 = scmp.ne.s32.totalorder %s183, %s186
      %p192 = scmp.eq.s32.totalorder %s26, 0
      %p193 = por %p191, %p192
      %p194 = scmp.ne.s32.totalorder %s183, %s186
      %p195 = scmp.eq.s32.totalorder %s31, 1
      %p196 = por %p194, %p195
      %p197 = scmp.ne.s32.totalorder %s186, %s187
      %p198 = scmp.eq.s32.totalorder %s31, 0
      %p199 = por %p197, %p198
      %p200 = scmp.ne.s32.totalorder %s186, %s187
      %p201 = scmp.eq.s32.totalorder %s32, 1
      %p202 = por %p200, %p201
      %p204 = scmp.ne.s32.totalorder %s187, %s203
      %p205 = scmp.eq.s32.totalorder %s32, 0
      %p206 = por %p204, %p205
      %s207 = ssub.s32 %s33, %s45
      %s208 = ssub.s32 %s34, %s41
      %s209 = sor.u32 %s207, %s208
      %p210 = scmp.eq.s32.totalorder %s209, 0
      %s212 = sadd.s32 %s211, 1
      %s213 = scalar_select %p210, %s211, %s212
      %p216 = pneg %p210
      %p217 = scmp.eq.s32.totalorder %s26, 1
      %p218 = por %p216, %p217
      %p219 = scmp.ne.s32.totalorder %s211, %s214
      %p220 = scmp.eq.s32.totalorder %s26, 0
      %p221 = por %p219, %p220
      %p222 = scmp.ne.s32.totalorder %s211, %s214
      %p223 = scmp.eq.s32.totalorder %s31, 1
      %p224 = por %p222, %p223
      %p225 = scmp.ne.s32.totalorder %s214, %s215
      %p226 = scmp.eq.s32.totalorder %s31, 0
      %p227 = por %p225, %p226
      %p228 = scmp.ne.s32.totalorder %s214, %s215
      %p229 = scmp.eq.s32.totalorder %s32, 1
      %p230 = por %p228, %p229
      %p232 = scmp.ne.s32.totalorder %s215, %s231
      %p233 = scmp.eq.s32.totalorder %s32, 0
      %p234 = por %p232, %p233
      %s235 = ssub.s32 %s33, %s45
      %s236 = ssub.s32 %s34, %s41
      %s237 = sor.u32 %s235, %s236
      %p238 = scmp.eq.s32.totalorder %s237, 0
      %s240 = sadd.s32 %s239, 1
      %s241 = scalar_select %p238, %s239, %s240
      %p244 = pneg %p238
      %p245 = scmp.eq.s32.totalorder %s26, 1
      %p246 = por %p244, %p245
      %p247 = scmp.ne.s32.totalorder %s239, %s242
      %p248 = scmp.eq.s32.totalorder %s26, 0
      %p249 = por %p247, %p248
      %p250 = scmp.ne.s32.totalorder %s239, %s242
      %p251 = scmp.eq.s32.totalorder %s31, 1
      %p252 = por %p250, %p251
      %p253 = scmp.ne.s32.totalorder %s242, %s243
      %p254 = scmp.eq.s32.totalorder %s31, 0
      %p255 = por %p253, %p254
      %p256 = scmp.ne.s32.totalorder %s242, %s243
      %p257 = scmp.eq.s32.totalorder %s32, 1
      %p258 = por %p256, %p257
      %p260 = scmp.ne.s32.totalorder %s243, %s259
      %p261 = scmp.eq.s32.totalorder %s32, 0
      %p262 = por %p260, %p261
      %p263 = scmp.le.s32.totalorder 1, %s26
      %p264 = scmp.lt.s32.totalorder %s26, 3
      %p265 = pnand %p263, %p264
      %p266 = pneg %p265
      // Predicated region
      $region9: #{tpu_custom_call.1} parent=5 // pred_check
        _
      $region10: #{tpu_custom_call.1} parent=5 // pred_check_branch
        %268 = sbr.rel (%p265) target = $region12
      $region11: #{tpu_custom_call.1} parent=5 // pred_region
        %s269 = ssub.s32 %s26, 1
        // Predicated region
        $region13: #{tpu_custom_call.1} parent=11 // pred_check
          %p270 = pneg %p87
        $region14: #{tpu_custom_call.1} parent=11 // pred_check_branch
          %272 = sbr.rel (%p270) target = $region16
        $region15: #{tpu_custom_call.1} parent=11 // pred_region
          _
        $region16: #{tpu_custom_call.1} parent=11 // pred_fallthru
          _
        // Predicated region
        $region17: #{tpu_custom_call.1} parent=11 // pred_check
          %p273 = pneg %p108
        $region18: #{tpu_custom_call.1} parent=11 // pred_check_branch
          %275 = sbr.rel (%p273) target = $region20
        $region19: #{tpu_custom_call.1} parent=11 // pred_region
          _
        $region20: #{tpu_custom_call.1} parent=11 // pred_fallthru
          _
        // Predicated region
        $region21: #{tpu_custom_call.1} parent=11 // pred_check
          %p276 = pneg %p129
        $region22: #{tpu_custom_call.1} parent=11 // pred_check_branch
          %278 = sbr.rel (%p276) target = $region24
        $region23: #{tpu_custom_call.1} parent=11 // pred_region
          %s280 = ssub.s32 64, 64
          %281 = vsyncadd [#allocation5], %s280
          %s283 = sshll.u32 %s3, 4
          %s284 = int_to_ptr.vmem [resolvable:$true] %s283
          %286 = dma.vmem_to_smem %s284, 64, [#allocation6], [#allocation5]
        $region24: #{tpu_custom_call.1} parent=11 // pred_fallthru
          _
        // Predicated region
        $region25: #{tpu_custom_call.1} parent=11 // pred_check
          %p287 = pneg %p150
        $region26: #{tpu_custom_call.1} parent=11 // pred_check_branch
          %289 = sbr.rel (%p287) target = $region28
        $region27: #{tpu_custom_call.1} parent=11 // pred_region
          %s291 = ssub.s32 16, 16
          %292 = vsyncadd [#allocation8], %s291
          %s294 = sshll.u32 %s4, 4
          %s295 = int_to_ptr.vmem [resolvable:$true] %s294
          %297 = dma.vmem_to_smem %s295, 16, [#allocation7], [#allocation8]
        $region28: #{tpu_custom_call.1} parent=11 // pred_fallthru
          _
        // Predicated region
        $region29: #{tpu_custom_call.1} parent=11 // pred_check
          %p298 = pneg %p171
        $region30: #{tpu_custom_call.1} parent=11 // pred_check_branch
          %300 = sbr.rel (%p298) target = $region32
        $region31: #{tpu_custom_call.1} parent=11 // pred_region
          %s302 = ssub.s32 16, 16
          %303 = vsyncadd [#allocation8], %s302
          %s305 = sshll.u32 %s5, 4
          %s306 = int_to_ptr.vmem [resolvable:$true] %s305
          %308 = dma.vmem_to_smem %s306, 16, [#allocation9], [#allocation8]
        $region32: #{tpu_custom_call.1} parent=11 // pred_fallthru
          _
      $region12: #{tpu_custom_call.1} parent=5 // pred_fallthru
        _
      %p309 = scmp.lt.s32.totalorder %s26, 2
      // Predicated region
      $region33: #{tpu_custom_call.1} parent=5 // pred_check
        %p310 = pneg %p309
      $region34: #{tpu_custom_call.1} parent=5 // pred_check_branch
        %312 = sbr.rel (%p310) target = $region36
      $region35: #{tpu_custom_call.1} parent=5 // pred_region
        // Predicated region
        $region37: #{tpu_custom_call.1} parent=35 // pred_check
          %p313 = pneg %p60
        $region38: #{tpu_custom_call.1} parent=35 // pred_check_branch
          %315 = sbr.rel (%p313) target = $region40
        $region39: #{tpu_custom_call.1} parent=35 // pred_region
          %s316 = sand.u32 %s50, 1
          %s317 = scalar_lea.sflag [#allocation3], %s316
          %s318 = sand.u32 %s50, 1
          %s319 = smul.addr %s318, 32
          %s320 = scalar_lea.vmem [#allocation2], %s319
          %s322 = ssub.s32 512, 512
          %323 = vsyncadd %s317, %s322
          %s324 = smul.addr %s33, 4
          %s325 = sadd.s32 %s34, %s324
          %s326 = smul.addr %s325, 128
          %s327 = scalar_lea.hbm %s0, %s326
          %s328 = sshll.u32 %s320, 4
          %s329 = int_to_ptr.vmem [resolvable:$true] %s328
          %334 = dma.hbm_to_vmem [thread:$0]  %s327, 512, %s329, %s317, 128, 128, 8
        $region40: #{tpu_custom_call.1} parent=35 // pred_fallthru
          _
      $region36: #{tpu_custom_call.1} parent=5 // pred_fallthru
        _
      %p335 = scmp.le.s32.totalorder 1, %s26
      %p336 = scmp.lt.s32.totalorder %s26, 3
      %p337 = pnand %p335, %p336
      %p338 = pneg %p337
      // Predicated region
      $region41: #{tpu_custom_call.1} parent=5 // pred_check
        _
      $region42: #{tpu_custom_call.1} parent=5 // pred_check_branch
        %340 = sbr.rel (%p337) target = $region44
      $region43: #{tpu_custom_call.1} parent=5 // pred_region
        %s341 = ssub.s32 %s26, 1
        %s342 = sand.u32 %s53, 1
        %s343 = scalar_lea.sflag [#allocation3], %s342
        %s344 = sand.u32 %s53, 1
        %s345 = smul.addr %s344, 32
        %s346 = scalar_lea.vmem [#allocation2], %s345
        // Predicated region
        $region45: #{tpu_custom_call.1} parent=43 // pred_check
          %p347 = pneg %p66
        $region46: #{tpu_custom_call.1} parent=43 // pred_check_branch
          %349 = sbr.rel (%p347) target = $region48
        $region47: #{tpu_custom_call.1} parent=43 // pred_region
          %350 = dma.done %s343, 512
        $region48: #{tpu_custom_call.1} parent=43 // pred_fallthru
          _
        // Predicated region
        $region49: #{tpu_custom_call.1} parent=43 // pred_check
          %p351 = pneg %p129
        $region50: #{tpu_custom_call.1} parent=43 // pred_check_branch
          %353 = sbr.rel (%p351) target = $region52
        $region51: #{tpu_custom_call.1} parent=43 // pred_region
          %354 = dma.done [#allocation5], 64
        $region52: #{tpu_custom_call.1} parent=43 // pred_fallthru
          _
        // Predicated region
        $region53: #{tpu_custom_call.1} parent=43 // pred_check
          %p355 = pneg %p150
        $region54: #{tpu_custom_call.1} parent=43 // pred_check_branch
          %357 = sbr.rel (%p355) target = $region56
        $region55: #{tpu_custom_call.1} parent=43 // pred_region
          %358 = dma.done [#allocation8], 16
        $region56: #{tpu_custom_call.1} parent=43 // pred_fallthru
          _
        // Predicated region
        $region57: #{tpu_custom_call.1} parent=43 // pred_check
          %p359 = pneg %p171
        $region58: #{tpu_custom_call.1} parent=43 // pred_check_branch
          %361 = sbr.rel (%p359) target = $region60
        $region59: #{tpu_custom_call.1} parent=43 // pred_region
          %362 = dma.done [#allocation8], 16
        $region60: #{tpu_custom_call.1} parent=43 // pred_fallthru
          _
        %363 = sfence
        %s364 = sand.u32 %s53, 1
        %s365 = scalar_lea.sflag [#allocation3], %s364
        %s366 = sand.u32 %s53, 1
        %s367 = smul.addr %s366, 32
        %s368 = scalar_lea.vmem [#allocation2], %s367
        %p369 = pneg %p66
        %p370 = pneg %p63
        %p371 = pneg %p87
        %p372 = pneg %p84
        %p373 = pneg %p108
        %p374 = pneg %p105
        %p375 = pneg %p129
        %p376 = pneg %p126
        %p377 = pneg %p150
        %p378 = pneg %p147
        %p379 = pneg %p171
        %p380 = pneg %p168
        %p381 = pneg %p199
        %p382 = pneg %p196
        %s383 = sand.u32 %s186, 1
        %s384 = scalar_lea.sflag [#allocation4], %s383
        %s385 = sand.u32 %s186, 1
        %s386 = smul.addr %s385, 8
        %s387 = scalar_lea.vmem [#allocation10], %s386
        %p388 = pneg %p227
        %p389 = pneg %p224
        %s390 = sand.u32 %s214, 1
        %s391 = scalar_lea.sflag [#allocation12], %s390
        %s392 = sand.u32 %s214, 1
        %s393 = smul.addr %s392, 32
        %s394 = scalar_lea.vmem [#allocation11], %s393
        %p395 = pneg %p255
        %p396 = pneg %p252
        %p397 = scmp.lt.s32.totalorder %s35, 1
        %s398 = scalar_select %p397, %s35, 1
        %p399 = scmp.lt.s32.totalorder %s36, 0
        %s400 = scalar_select %p399, %s36, 0
        %s401 = smul.addr %s398, 4
        %s402 = sadd.s32 %s400, %s401
        %s403 = smul.addr %s402, 8
        %s404 = scalar_lea.vmem %s8, %s403
        %p405 = scmp.lt.s32.totalorder %s35, 1
        %s406 = scalar_select %p405, %s35, 1
        %p407 = scmp.lt.s32.totalorder %s36, 0
        %s408 = scalar_select %p407, %s36, 0
        %s409 = smul.addr %s406, 4
        %s410 = sadd.s32 %s408, %s409
        %s411 = smul.addr %s410, 8
        %s412 = scalar_lea.vmem %s8, %s411
        %s413 = sld [smem:[#allocation9]]
        %s414 = sld [smem:[#allocation9 + $0x1]]
        %v415 = vld [vmem:[%s346] sm:$0xff]
        %v416 = vld [vmem:[%s346 + $0x8] sm:$0xff]
        %v417 = vld [vmem:[%s346 + $0x10] sm:$0xff]
        %v418 = vld [vmem:[%s346 + $0x18] sm:$0xff]
        %v419 = vmul.f32 %v415, %v415
        %v420 = vmul.f32 %v416, %v416
        %v421 = vmul.f32 %v417, %v417
        %v422 = vmul.f32 %v418, %v418
        %vm423 = vcmask 261120
        %v424 = vsel %vm423, %v419, 0.0
        %425 = vadd.xlane.f32.xlu0 %v424
        %v426 = vpop.xlane.xlu0 %425
        %v427 = vsel %vm423, %v420, 0.0
        %428 = vadd.xlane.f32.xlu0 %v427
        %v429 = vpop.xlane.xlu0 %428
        %v430 = vsel %vm423, %v421, 0.0
        %431 = vadd.xlane.f32.xlu0 %v430
        %v432 = vpop.xlane.xlu0 %431
        %v433 = vsel %vm423, %v422, 0.0
        %434 = vadd.xlane.f32.xlu0 %v433
        %v435 = vpop.xlane.xlu0 %434
        %v436 = vmax.f32 %v426, 1e-24
        %v437 = vmax.f32 %v429, 1e-24
        %v438 = vmax.f32 %v432, 1e-24
        %v439 = vmax.f32 %v435, 1e-24
        %v440 = vrsqrt.pop %v436
        %v441 = vrsqrt.pop %v437
        %v442 = vrsqrt.pop %v438
        %v443 = vrsqrt.pop %v439
        %v444 = vld [vmem:[%s1] sm:$0x1]
        %v445 = vadd.f32 %v444, 1.0
        %v446 = vmul.f32 %v445, 5.656854
        %v447 = vmul.f32 %v415, %v440
        %v448 = vmul.f32 %v416, %v441
        %v449 = vmul.f32 %v417, %v442
        %v450 = vmul.f32 %v418, %v443
        %v452 = vlaneseq
        %v453 = vshrl.u32 %v452, 7
        %v454 = vsub.s32 0, %v453
        %v455 = vrot.slane %v446, %v454
        %v457 = vmul.f32 %v447, %v455
        %v458 = vmul.f32 %v448, %v455
        %v459 = vmul.f32 %v449, %v455
        %v460 = vmul.f32 %v450, %v455
        %v461 = vld [vmem:[%s2] sm:$0xff]
        %v462 = vld [vmem:[%s2 + $0x8] sm:$0xff]
        %v463 = vld [vmem:[%s2 + $0x10] sm:$0xff]
        %v464 = vld [vmem:[%s2 + $0x18] sm:$0xff]
        %v466 = vsel %vm423, %v457, 0
        %v469 = vsel %vm423, %v458, 0
        %v472 = vsel %vm423, %v459, 0
        %v475 = vsel %vm423, %v460, 0
        %477 = vmatprep.subr.mxu0 0.0
        %478 = vmatpush1.msra.mxu0 0.0
        %479 = vmatprep.subr.mxu0 0.0
        %480 = vmatpush1.msra.mxu0 0.0
        %481 = vmatprep.subr.mxu0 0.0
        %482 = vmatpush1.msra.mxu0 0.0
        %483 = vmatprep.subr.mxu0 0.0
        %484 = vmatpush1.msra.mxu0 0.0
        %485 = vmatprep.subr.mxu0 0.0
        %486 = vmatpush1.msra.mxu0 0.0
        %487 = vmatprep.subr.mxu0 0.0
        %488 = vmatpush1.msra.mxu0 0.0
        %489 = vmatprep.subr.mxu0 0.0
        %490 = vmatpush1.msra.mxu0 0.0
        %491 = vmatprep.subr.mxu0 0.0
        %492 = vmatpush1.msra.mxu0 0.0
        %493 = vmatprep.subr.mxu0 0.0
        %494 = vmatpush1.msra.mxu0 0.0
        %495 = vmatprep.subr.mxu0 0.0
        %496 = vmatpush1.msra.mxu0 0.0
        %497 = vmatprep.subr.mxu0 0.0
        %498 = vmatpush1.msra.mxu0 0.0
        %499 = vmatprep.subr.mxu0 0.0
        %500 = vmatpush1.msra.mxu0 0.0
        %501 = vmatprep.subr.mxu0 0.0
        %502 = vmatpush1.msra.mxu0 %v464
        %503 = vmatprep.subr.mxu0 0.0
        %504 = vmatpush1.msra.mxu0 %v463
        %505 = vmatprep.subr.mxu0 0.0
        %506 = vmatpush1.msra.mxu0 %v462
        %507 = vmatprep.subr.mxu0 0.0
        %508 = vmatpush1.msra.mxu0 %v461
        %509 = vmatprep.subr.mxu0 0.0
        %510 = vmatpush2.msra.mxu0 0.0
        %511 = vmatprep.subr.mxu0 0.0
        %512 = vmatpush2.msra.mxu0 0.0
        %513 = vmatprep.subr.mxu0 0.0
        %514 = vmatpush2.msra.mxu0 0.0
        %515 = vmatprep.subr.mxu0 0.0
        %516 = vmatpush2.msra.mxu0 0.0
        %517 = vmatprep.subr.mxu0 0.0
        %518 = vmatpush2.msra.mxu0 0.0
        %519 = vmatprep.subr.mxu0 0.0
        %520 = vmatpush2.msra.mxu0 0.0
        %521 = vmatprep.subr.mxu0 0.0
        %522 = vmatpush2.msra.mxu0 0.0
        %523 = vmatprep.subr.mxu0 0.0
        %524 = vmatpush2.msra.mxu0 0.0
        %525 = vmatprep.subr.mxu0 0.0
        %526 = vmatpush2.msra.mxu0 0.0
        %527 = vmatprep.subr.mxu0 0.0
        %528 = vmatpush2.msra.mxu0 0.0
        %529 = vmatprep.subr.mxu0 0.0
        %530 = vmatpush2.msra.mxu0 0.0
        %531 = vmatprep.subr.mxu0 0.0
        %532 = vmatpush2.msra.mxu0 0.0
        %533 = vmatprep.subr.mxu0 0.0
        %534 = vmatpush2.msra.mxu0 0.0
        %535 = vmatprep.subr.mxu0 0.0
        %536 = vmatpush2.msra.mxu0 0.0
        %537 = vmatprep.subr.mxu0 0.0
        %538 = vmatpush2.msra.mxu0 0.0
        %539 = vmatprep.subr.mxu0 0.0
        %540 = vmatpush2.msra.mxu0 0.0
        %541 = vmatprep.mubr.f32.mxu0 0.0
        %542 = vmatmul.mubr.f32.gmra.mxu0 %v466
        %v543 = vpop.f32.mrf.mxu0
        %v544 = vadd.f32 0.0, %v543
        %v545 = vpop.f32.mrf.mxu0
        %546 = vmatprep.mubr.f32.mxu0 0.0
        %547 = vmatmul.mubr.f32.gmra.mxu0 %v469
        %v548 = vpop.f32.mrf.mxu0
        %v549 = vadd.f32 0.0, %v548
        %v550 = vpop.f32.mrf.mxu0
        %551 = vmatprep.mubr.f32.mxu0 0.0
        %552 = vmatmul.mubr.f32.gmra.mxu0 %v472
        %v553 = vpop.f32.mrf.mxu0
        %v554 = vadd.f32 0.0, %v553
        %v555 = vpop.f32.mrf.mxu0
        %556 = vmatprep.mubr.f32.mxu0 0.0
        %557 = vmatmul.mubr.f32.gmra.mxu0 %v475
        %v558 = vpop.f32.mrf.mxu0
        %v559 = vadd.f32 0.0, %v558
        %v560 = vpop.f32.mrf.mxu0
        %561 = vdwg.mxu0
        %v562 = vtanh.pop %v544
        %v563 = vtanh.pop %v549
        %v564 = vtanh.pop %v554
        %v565 = vtanh.pop %v559
        %v566 = vstv %s414
        %v567 = vmul.f32 %v562, %v566
        %s568 = sld [smem:[#allocation7]]
        %v569 = vstv %s568
        %v570 = vadd.f32 %v567, %v569
        %572 = vrot.lane.b32.xlu0 %v570, 123
        %v573 = vpop.permute.xlu0 %572
        %vm575 = vcmask 7168
        %576 = vst.msk [vmem:[%s412] sm:$0xff] %vm575, %v573
        %v577 = vmul.f32 %v563, %v566
        %s578 = sld [smem:[#allocation7 + $0x1]]
        %v579 = vstv %s578
        %v580 = vadd.f32 %v577, %v579
        %582 = vrot.lane.b32.xlu0 %v580, 123
        %v583 = vpop.permute.xlu0 %582
        %s585 = scalar_lea.vmem %s412, 8
        %586 = vst.msk [vmem:[%s585] sm:$0xff] %vm575, %v583
        %v587 = vmul.f32 %v564, %v566
        %s588 = sld [smem:[#allocation7 + $0x2]]
        %v589 = vstv %s588
        %v590 = vadd.f32 %v587, %v589
        %592 = vrot.lane.b32.xlu0 %v590, 123
        %v593 = vpop.permute.xlu0 %592
        %s595 = scalar_lea.vmem %s412, 16
        %596 = vst.msk [vmem:[%s595] sm:$0xff] %vm575, %v593
        %v597 = vmul.f32 %v565, %v566
        %s598 = sld [smem:[#allocation7 + $0x3]]
        %v599 = vstv %s598
        %v600 = vadd.f32 %v597, %v599
        %602 = vrot.lane.b32.xlu0 %v600, 123
        %v603 = vpop.permute.xlu0 %602
        %s605 = scalar_lea.vmem %s412, 24
        %606 = vst.msk [vmem:[%s605] sm:$0xff] %vm575, %v603
        %v607 = vstv %s413
        %v608 = vmul.f32 %v562, %v607
        %s609 = sld [smem:[#allocation6]]
        %v610 = vstv %s609
        %v611 = vadd.f32 %v608, %v610
        %613 = vset.pattern.permute.xlu0 0
        %614 = vperm.xlu0 %613, %v611
        %v615 = vpop.permute.xlu0 %614
        %v617 = vmul.f32 %v615, %v415
        %v618 = vmul.f32 %v563, %v607
        %s619 = sld [smem:[#allocation6 + $0x80]]
        %v620 = vstv %s619
        %v621 = vadd.f32 %v618, %v620
        %623 = vset.pattern.permute.xlu0 0
        %624 = vperm.xlu0 %623, %v621
        %v625 = vpop.permute.xlu0 %624
        %v627 = vmul.f32 %v625, %v416
        %v628 = vadd.f32 %v617, %v627
        %v629 = vmul.f32 %v564, %v607
        %s630 = sld [smem:[#allocation6 + $0x100]]
        %v631 = vstv %s630
        %v632 = vadd.f32 %v629, %v631
        %634 = vset.pattern.permute.xlu0 0
        %635 = vperm.xlu0 %634, %v632
        %v636 = vpop.permute.xlu0 %635
        %v638 = vmul.f32 %v636, %v417
        %v639 = vadd.f32 %v628, %v638
        %v640 = vmul.f32 %v565, %v607
        %s641 = sld [smem:[#allocation6 + $0x180]]
        %v642 = vstv %s641
        %v643 = vadd.f32 %v640, %v642
        %645 = vset.pattern.permute.xlu0 0
        %646 = vperm.xlu0 %645, %v643
        %v647 = vpop.permute.xlu0 %646
        %v649 = vmul.f32 %v647, %v418
        %v650 = vadd.f32 %v639, %v649
        %651 = vst.msk [vmem:[%s387] sm:$0xff] %vm423, %v650
        %s652 = sld [smem:[#allocation6 + $0x1]]
        %v653 = vstv %s652
        %v654 = vadd.f32 %v608, %v653
        %656 = vset.pattern.permute.xlu0 1
        %657 = vperm.xlu0 %656, %v654
        %v658 = vpop.permute.xlu0 %657
        %v660 = vmul.f32 %v658, %v415
        %s661 = sld [smem:[#allocation6 + $0x81]]
        %v662 = vstv %s661
        %v663 = vadd.f32 %v618, %v662
        %665 = vset.pattern.permute.xlu0 1
        %666 = vperm.xlu0 %665, %v663
        %v667 = vpop.permute.xlu0 %666
        %v669 = vmul.f32 %v667, %v416
        %v670 = vadd.f32 %v660, %v669
        %s671 = sld [smem:[#allocation6 + $0x101]]
        %v672 = vstv %s671
        %v673 = vadd.f32 %v629, %v672
        %675 = vset.pattern.permute.xlu0 1
        %676 = vperm.xlu0 %675, %v673
        %v677 = vpop.permute.xlu0 %676
        %v679 = vmul.f32 %v677, %v417
        %v680 = vadd.f32 %v670, %v679
        %s681 = sld [smem:[#allocation6 + $0x181]]
        %v682 = vstv %s681
        %v683 = vadd.f32 %v640, %v682
        %685 = vset.pattern.permute.xlu0 1
        %686 = vperm.xlu0 %685, %v683
        %v687 = vpop.permute.xlu0 %686
        %v689 = vmul.f32 %v687, %v418
        %v690 = vadd.f32 %v680, %v689
        %691 = vst.msk [vmem:[%s394] sm:$0xff] %vm423, %v690
        %s692 = sld [smem:[#allocation6 + $0x2]]
        %v693 = vstv %s692
        %v694 = vadd.f32 %v608, %v693
        %696 = vset.pattern.permute.xlu0 2
        %697 = vperm.xlu0 %696, %v694
        %v698 = vpop.permute.xlu0 %697
        %v700 = vmul.f32 %v698, %v415
        %s701 = sld [smem:[#allocation6 + $0x82]]
        %v702 = vstv %s701
        %v703 = vadd.f32 %v618, %v702
        %705 = vset.pattern.permute.xlu0 2
        %706 = vperm.xlu0 %705, %v703
        %v707 = vpop.permute.xlu0 %706
        %v709 = vmul.f32 %v707, %v416
        %v710 = vadd.f32 %v700, %v709
        %s711 = sld [smem:[#allocation6 + $0x102]]
        %v712 = vstv %s711
        %v713 = vadd.f32 %v629, %v712
        %715 = vset.pattern.permute.xlu0 2
        %716 = vperm.xlu0 %715, %v713
        %v717 = vpop.permute.xlu0 %716
        %v719 = vmul.f32 %v717, %v417
        %v720 = vadd.f32 %v710, %v719
        %s721 = sld [smem:[#allocation6 + $0x182]]
        %v722 = vstv %s721
        %v723 = vadd.f32 %v640, %v722
        %725 = vset.pattern.permute.xlu0 2
        %726 = vperm.xlu0 %725, %v723
        %v727 = vpop.permute.xlu0 %726
        %v729 = vmul.f32 %v727, %v418
        %v730 = vadd.f32 %v720, %v729
        %s731 = scalar_lea.vmem %s394, 8 [#allocation11]
        %732 = vst.msk [vmem:[%s731] sm:$0xff] %vm423, %v730
        %s733 = sld [smem:[#allocation6 + $0x3]]
        %v734 = vstv %s733
        %v735 = vadd.f32 %v608, %v734
        %737 = vset.pattern.permute.xlu0 3
        %738 = vperm.xlu0 %737, %v735
        %v739 = vpop.permute.xlu0 %738
        %v741 = vmul.f32 %v739, %v415
        %s742 = sld [smem:[#allocation6 + $0x83]]
        %v743 = vstv %s742
        %v744 = vadd.f32 %v618, %v743
        %746 = vset.pattern.permute.xlu0 3
        %747 = vperm.xlu0 %746, %v744
        %v748 = vpop.permute.xlu0 %747
        %v750 = vmul.f32 %v748, %v416
        %v751 = vadd.f32 %v741, %v750
        %s752 = sld [smem:[#allocation6 + $0x103]]
        %v753 = vstv %s752
        %v754 = vadd.f32 %v629, %v753
        %756 = vset.pattern.permute.xlu0 3
        %757 = vperm.xlu0 %756, %v754
        %v758 = vpop.permute.xlu0 %757
        %v760 = vmul.f32 %v758, %v417
        %v761 = vadd.f32 %v751, %v760
        %s762 = sld [smem:[#allocation6 + $0x183]]
        %v763 = vstv %s762
        %v764 = vadd.f32 %v640, %v763
        %766 = vset.pattern.permute.xlu0 3
        %767 = vperm.xlu0 %766, %v764
        %v768 = vpop.permute.xlu0 %767
        %v770 = vmul.f32 %v768, %v418
        %v771 = vadd.f32 %v761, %v770
        %s772 = scalar_lea.vmem %s394, 16 [#allocation11]
        %773 = vst.msk [vmem:[%s772] sm:$0xff] %vm423, %v771
        %s774 = sld [smem:[#allocation6 + $0x4]]
        %v775 = vstv %s774
        %v776 = vadd.f32 %v608, %v775
        %778 = vset.pattern.permute.xlu0 4
        %779 = vperm.xlu0 %778, %v776
        %v780 = vpop.permute.xlu0 %779
        %v782 = vmul.f32 %v780, %v415
        %s783 = sld [smem:[#allocation6 + $0x84]]
        %v784 = vstv %s783
        %v785 = vadd.f32 %v618, %v784
        %787 = vset.pattern.permute.xlu0 4
        %788 = vperm.xlu0 %787, %v785
        %v789 = vpop.permute.xlu0 %788
        %v791 = vmul.f32 %v789, %v416
        %v792 = vadd.f32 %v782, %v791
        %s793 = sld [smem:[#allocation6 + $0x104]]
        %v794 = vstv %s793
        %v795 = vadd.f32 %v629, %v794
        %797 = vset.pattern.permute.xlu0 4
        %798 = vperm.xlu0 %797, %v795
        %v799 = vpop.permute.xlu0 %798
        %v801 = vmul.f32 %v799, %v417
        %v802 = vadd.f32 %v792, %v801
        %s803 = sld [smem:[#allocation6 + $0x184]]
        %v804 = vstv %s803
        %v805 = vadd.f32 %v640, %v804
        %807 = vset.pattern.permute.xlu0 4
        %808 = vperm.xlu0 %807, %v805
        %v809 = vpop.permute.xlu0 %808
        %v811 = vmul.f32 %v809, %v418
        %v812 = vadd.f32 %v802, %v811
        %s813 = scalar_lea.vmem %s394, 24 [#allocation11]
        %814 = vst.msk [vmem:[%s813] sm:$0xff] %vm423, %v812
        %s815 = sand.u32 %s186, 1
        %s816 = scalar_lea.sflag [#allocation4], %s815
        %s817 = sand.u32 %s186, 1
        %s818 = smul.addr %s817, 8
        %s819 = scalar_lea.vmem [#allocation10], %s818
        %s820 = sand.u32 %s214, 1
        %s821 = scalar_lea.sflag [#allocation12], %s820
        %s822 = sand.u32 %s214, 1
        %s823 = smul.addr %s822, 32
        %s824 = scalar_lea.vmem [#allocation11], %s823
        %p825 = scmp.lt.s32.totalorder %s35, 1
        %s826 = scalar_select %p825, %s35, 1
        %p827 = scmp.lt.s32.totalorder %s36, 0
        %s828 = scalar_select %p827, %s36, 0
        %s829 = smul.addr %s826, 4
        %s830 = sadd.s32 %s828, %s829
        %s831 = smul.addr %s830, 8
        %s832 = scalar_lea.vmem %s8, %s831
        // Predicated region
        $region61: #{tpu_custom_call.1} parent=43 // pred_check
          %p833 = pneg %p196
        $region62: #{tpu_custom_call.1} parent=43 // pred_check_branch
          %835 = sbr.rel (%p833) target = $region64
        $region63: #{tpu_custom_call.1} parent=43 // pred_region
          %s837 = ssub.s32 128, 128
          %838 = vsyncadd %s816, %s837
          %s839 = sadd.s32 %s36, %s35
          %s840 = smul.addr %s839, 128
          %s841 = scalar_lea.hbm %s6, %s840
          %s843 = sshll.u32 %s819, 4
          %s844 = int_to_ptr.vmem [resolvable:$true] %s843
          %846 = dma.vmem_to_hbm [thread:$0]  %s844, 128, %s841, %s816
        $region64: #{tpu_custom_call.1} parent=43 // pred_fallthru
          _
        // Predicated region
        $region65: #{tpu_custom_call.1} parent=43 // pred_check
          %p847 = pneg %p224
        $region66: #{tpu_custom_call.1} parent=43 // pred_check_branch
          %849 = sbr.rel (%p847) target = $region68
        $region67: #{tpu_custom_call.1} parent=43 // pred_region
          %s851 = ssub.s32 512, 512
          %852 = vsyncadd %s821, %s851
          %s853 = smul.addr %s35, 4
          %s854 = sadd.s32 %s36, %s853
          %s855 = smul.addr %s854, 128
          %s856 = scalar_lea.hbm %s7, %s855
          %s857 = sshll.u32 %s824, 4
          %s858 = int_to_ptr.vmem [resolvable:$true] %s857
          %863 = dma.vmem_to_hbm [thread:$0]  %s858, 512, %s856, %s821, 128, 128, 8
        $region68: #{tpu_custom_call.1} parent=43 // pred_fallthru
          _
        // Predicated region
        $region69: #{tpu_custom_call.1} parent=43 // pred_check
          %p864 = pneg %p252
        $region70: #{tpu_custom_call.1} parent=43 // pred_check_branch
          %866 = sbr.rel (%p864) target = $region72
        $region71: #{tpu_custom_call.1} parent=43 // pred_region
          _
        $region72: #{tpu_custom_call.1} parent=43 // pred_fallthru
          _
      $region44: #{tpu_custom_call.1} parent=5 // pred_fallthru
        _
      %p867 = scmp.le.s32.totalorder 2, %s26
      // Predicated region
      $region73: #{tpu_custom_call.1} parent=5 // pred_check
        %p868 = pneg %p867
      $region74: #{tpu_custom_call.1} parent=5 // pred_check_branch
        %870 = sbr.rel (%p868) target = $region76
      $region75: #{tpu_custom_call.1} parent=5 // pred_region
        %s871 = ssub.s32 %s26, 2
        // Predicated region
        $region77: #{tpu_custom_call.1} parent=75 // pred_check
          %p872 = pneg %p202
        $region78: #{tpu_custom_call.1} parent=75 // pred_check_branch
          %874 = sbr.rel (%p872) target = $region80
        $region79: #{tpu_custom_call.1} parent=75 // pred_region
          %s875 = sand.u32 %s187, 1
          %s876 = scalar_lea.sflag [#allocation4], %s875
          %s877 = sand.u32 %s187, 1
          %s878 = smul.addr %s877, 8
          %s879 = scalar_lea.vmem [#allocation10], %s878
          %880 = dma.done %s876, 128
        $region80: #{tpu_custom_call.1} parent=75 // pred_fallthru
          _
        // Predicated region
        $region81: #{tpu_custom_call.1} parent=75 // pred_check
          %p881 = pneg %p230
        $region82: #{tpu_custom_call.1} parent=75 // pred_check_branch
          %883 = sbr.rel (%p881) target = $region84
        $region83: #{tpu_custom_call.1} parent=75 // pred_region
          %s884 = sand.u32 %s215, 1
          %s885 = scalar_lea.sflag [#allocation12], %s884
          %s886 = sand.u32 %s215, 1
          %s887 = smul.addr %s886, 32
          %s888 = scalar_lea.vmem [#allocation11], %s887
          %889 = dma.done %s885, 512
        $region84: #{tpu_custom_call.1} parent=75 // pred_fallthru
          _
        // Predicated region
        $region85: #{tpu_custom_call.1} parent=75 // pred_check
          %p890 = pneg %p258
        $region86: #{tpu_custom_call.1} parent=75 // pred_check_branch
          %892 = sbr.rel (%p890) target = $region88
        $region87: #{tpu_custom_call.1} parent=75 // pred_region
          %p893 = scmp.lt.s32.totalorder %s37, 1
          %s894 = scalar_select %p893, %s37, 1
          %p895 = scmp.lt.s32.totalorder %s38, 0
          %s896 = scalar_select %p895, %s38, 0
          %s897 = smul.addr %s894, 4
          %s898 = sadd.s32 %s896, %s897
          %s899 = smul.addr %s898, 8
          %s900 = scalar_lea.vmem %s8, %s899
        $region88: #{tpu_custom_call.1} parent=75 // pred_fallthru
          _
      $region76: #{tpu_custom_call.1} parent=5 // pred_fallthru
        _
    $region6: #{tpu_custom_call.1} parent=1 // loop_footer
      %s30 = sadd.s32 1, %s26
    $region7: #{tpu_custom_call.1} parent=1 // loop_footer_branch
      %25 = sbr.rel target = $region3
    $region8: #{tpu_custom_call.1} parent=1 // loop_exit
      _
    %901 = vsyncpa [#allocation3], 1
    %s902 = scalar_lea.sflag [#allocation3], 1
    %903 = vsyncpa %s902, 1
    %904 = vsyncpa [#allocation4], 1
    %s905 = scalar_lea.sflag [#allocation4], 1
    %906 = vsyncpa %s905, 1
    %907 = vsyncpa [#allocation12], 1
    %s908 = scalar_lea.sflag [#allocation12], 1
    %909 = vsyncpa %s908, 1
    %910 = vsyncpa [#allocation5], 1
    %s911 = scalar_lea.sflag [#allocation5], 1
    %912 = vsyncpa %s911, 1
    %913 = vsyncpa [#allocation8], 1

</llo_original>
